<compile_context>
chip_gen: v5e
topology: v5e:2x2
jax: 0.10.0
libtpu: 0.0.40
codegen_flags: <defaults>
</compile_context>

<pallas_src>
import math
from functools import partial

import jax
import jax.numpy as jnp
from jax.experimental import pallas as pl
from jax.experimental.pallas import tpu as pltpu


def _round_up(n, m):
    return (n + m - 1) // m * m


# ---------------------------------------------------------------------------
# Pallas kernel: serial LSTM recurrence (only h_prev @ W_hh remains per step).
# ---------------------------------------------------------------------------
def _lstm_recurrence_kernel(xg_ref, w_hh_ref, o_ref):
    """xg_ref : (T, Bp, 4*Fp) f32   precomputed x @ W_ih + b, gates [i|f|o|g]
       w_hh_ref: (Fp, 4*Fp)   bf16  recurrent weights, same gate packing
       o_ref  : (T, Bp, Fp)   f32   hidden states h_1..h_T
    """
    T, Bp, Fp = o_ref.shape

    def step(t, carry):
        h, c = carry
        # One fused (Bp,Fp) @ (Fp,4Fp) bf16 MXU matmul for all four gates.
        pre = xg_ref[t] + jnp.dot(
            h.astype(jnp.bfloat16), w_hh_ref[...],
            preferred_element_type=jnp.float32)
        sig = jax.nn.sigmoid(pre[:, : 3 * Fp])        # [i | f | o] one EUP pass
        g = jnp.tanh(pre[:, 3 * Fp:])
        i_g = sig[:, :Fp]
        f_g = sig[:, Fp: 2 * Fp]
        o_g = sig[:, 2 * Fp: 3 * Fp]
        c_new = f_g * c + i_g * g
        h_new = o_g * jnp.tanh(c_new)
        o_ref[t] = h_new.astype(o_ref.dtype)
        return h_new, c_new

    zeros = jnp.zeros((Bp, Fp), jnp.float32)
    jax.lax.fori_loop(0, T, step, (zeros, zeros), unroll=T <= 16)


def _lstm_recurrence_pallas(xg, w_hh):
    """xg: (T, Bp, 4*Fp) f32, w_hh: (Fp, 4*Fp) bf16 -> (T, Bp, Fp) f32."""
    T, Bp, F4 = xg.shape
    Fp = F4 // 4
    resident = (xg.size * xg.dtype.itemsize
                + w_hh.size * w_hh.dtype.itemsize
                + T * Bp * Fp * 4)
    # Size the scoped VMEM from the actual buffers, with headroom; cap v7x-safe.
    vmem_limit = int(min(max(2 * resident + (4 << 20), 16 << 20), 56 << 20))
    vmem = pltpu.MemorySpace.VMEM

    return pl.pallas_call(
        _lstm_recurrence_kernel,
        out_shape=jax.ShapeDtypeStruct((T, Bp, Fp), jnp.float32),
        in_specs=[pl.BlockSpec(memory_space=vmem),    # xg resident, single copy
                  pl.BlockSpec(memory_space=vmem)],   # W_hh resident, single copy
        out_specs=pl.BlockSpec(memory_space=vmem),
        compiler_params=pltpu.CompilerParams(vmem_limit_bytes=vmem_limit),
    )(xg, w_hh)


# ---------------------------------------------------------------------------
# Parameter init (PyTorch-style U(-1/sqrt(F), 1/sqrt(F))), packed for the kernel.
# ---------------------------------------------------------------------------
def init_temporal_lstm_params(key, num_channels, num_layers):
    """Per layer:
         w_ih : (Fp, 4*Fp) f32   gate blocks [i|f|o|g], zero-padded, used as x @ w_ih
         w_hh : (Fp, 4*Fp) bf16  same packing, used as h @ w_hh
         b    : (1, 4*Fp)  f32   b_ih + b_hh
       NOTE: layout is the transpose of PyTorch's stored weight_ih_l{k}/weight_hh_l{k}
       and the gate order is [i,f,o,g] (PyTorch stores [i,f,g,o]); importing a real
       nn.LSTM checkpoint requires splitting, transposing and reordering the blocks.
    """
    F_ = num_channels
    Fp = _round_up(F_, 128)
    k = 1.0 / math.sqrt(F_)
    params = []
    for _ in range(num_layers):
        key, k1, k2, k3, k4 = jax.random.split(key, 5)
        w_ih = jax.random.uniform(k1, (4, F_, F_), jnp.float32, -k, k)
        w_hh = jax.random.uniform(k2, (4, F_, F_), jnp.float32, -k, k)
        b = (jax.random.uniform(k3, (4, F_), jnp.float32, -k, k)
             + jax.random.uniform(k4, (4, F_), jnp.float32, -k, k))

        w_ih_p = jnp.zeros((Fp, 4 * Fp), jnp.float32)
        w_hh_p = jnp.zeros((Fp, 4 * Fp), jnp.float32)
        b_p = jnp.zeros((1, 4 * Fp), jnp.float32)
        for g in range(4):
            w_ih_p = w_ih_p.at[:F_, g * Fp: g * Fp + F_].set(w_ih[g])
            w_hh_p = w_hh_p.at[:F_, g * Fp: g * Fp + F_].set(w_hh[g])
            b_p = b_p.at[0, g * Fp: g * Fp + F_].set(b[g])

        params.append(dict(w_ih=w_ih_p,
                           w_hh=w_hh_p.astype(jnp.bfloat16),
                           b=b_p))
    return params


# ---------------------------------------------------------------------------
# Module wrapper
# ---------------------------------------------------------------------------
@partial(jax.jit, static_argnums=(2,))
def temporal_lstm_layer(X, params, num_channels):
    """X: (B, T, C, H, W) -> (B, T, C, H, W); stacked LSTM over flattened features."""
    B, T, C, H, W = X.shape
    F_ = C * H * W
    assert F_ == num_channels, "The features size does not fit!"

    Fp = params[0]["w_ih"].shape[0]
    Bp = _round_up(max(B, 8), 8)

    # Time-major, zero-padded to lane/sublane-aligned (Bp, Fp).
    x = X.reshape(B, T, F_).transpose(1, 0, 2).astype(jnp.float32)
    x = jnp.zeros((T, Bp, Fp), jnp.float32).at[:, :B, :F_].set(x)

    for layer in params:
        # Hoisted input projection: all T timesteps in one large MXU matmul (XLA).
        xg = jnp.dot(x.reshape(T * Bp, Fp), layer["w_ih"],
                     precision=jax.lax.Precision.HIGHEST,
                     preferred_element_type=jnp.float32)
        xg = (xg + layer["b"]).reshape(T, Bp, 4 * Fp)
        # Serial recurrence in Pallas; padded rows/cols stay isolated / zero.
        x = _lstm_recurrence_pallas(xg, layer["w_hh"])

    return x[:, :B, :F_].transpose(1, 0, 2).reshape(B, T, C, H, W).astype(X.dtype)


# ---------------------------------------------------------------------------
# Pure-JAX reference (mirrors nn.LSTM forward with zero initial state,
# reconstructed from the same packed parameters).
# ---------------------------------------------------------------------------
def _temporal_lstm_ref(X, params, num_channels):
    B, T, C, H, W = X.shape
    F_ = num_channels
    Fp = params[0]["w_ih"].shape[0]
    hi = jax.lax.Precision.HIGHEST

    x = X.reshape(B, T, F_).transpose(1, 0, 2).astype(jnp.float32)   # (T, B, F)
    for layer in params:
        w_ih = layer["w_ih"]
        w_hh = layer["w_hh"].astype(jnp.float32)
        b = layer["b"]
        Wi = [w_ih[:F_, g * Fp: g * Fp + F_] for g in range(4)]      # [i, f, o, g]
        Wh = [w_hh[:F_, g * Fp: g * Fp + F_] for g in range(4)]
        bg = [b[0, g * Fp: g * Fp + F_] for g in range(4)]

        def step(carry, x_t, Wi=Wi, Wh=Wh, bg=bg):
            h, c = carry
            pre = [jnp.dot(x_t, Wi[g], precision=hi)
                   + jnp.dot(h, Wh[g], precision=hi) + bg[g] for g in range(4)]
            i = jax.nn.sigmoid(pre[0])
            f = jax.nn.sigmoid(pre[1])
            o = jax.nn.sigmoid(pre[2])
            g_ = jnp.tanh(pre[3])
            c_new = f * c + i * g_
            h_new = o * jnp.tanh(c_new)
            return (h_new, c_new), h_new

        init = (jnp.zeros((B, F_), jnp.float32), jnp.zeros((B, F_), jnp.float32))
        _, x = jax.lax.scan(step, init, x)

    return x.transpose(1, 0, 2).reshape(B, T, C, H, W)


if __name__ == "__main__":
    key = jax.random.PRNGKey(0)
    # Small shapes: batch=2, seq=8, channels=2, spatial 4x4 -> num_channels = 32.
    B, T, C, H, W = 2, 8, 2, 4, 4
    num_channels = C * H * W        # 32 (LSTM hidden size), padded to 128 lanes
    num_layers = 2

    k_x, k_p = jax.random.split(key)
    X = jax.random.normal(k_x, (B, T, C, H, W), dtype=jnp.float32)
    params = init_temporal_lstm_params(k_p, num_channels, num_layers)

    out = temporal_lstm_layer(X, params, num_channels)
    out = jax.block_until_ready(out)

    ref = _temporal_lstm_ref(X, params, num_channels)
    assert out.shape == (B, T, C, H, W)
    err = float(jnp.max(jnp.abs(out - ref)))
    # Tolerance covers the bf16 W_hh / bf16 h MXU path vs the f32 reference.
    assert err < 2e-2, f"mismatch vs reference: max abs err {err}"

    print("KERNEL_OK")
</pallas_src>

<mosaic_0001>
module attributes {stable_mosaic.version = 11 : i64} {
  func.func @_lstm_recurrence_kernel(%arg0: memref<8x8x512xf32, #tpu.memory_space<vmem>>, %arg1: memref<128x512xbf16, #tpu.memory_space<vmem>>, %arg2: memref<8x8x128xf32, #tpu.memory_space<vmem>>) attributes {dimension_semantics = [], scalar_prefetch = 0 : i64, scratch_operands = 0 : i64, tpu.core_type = #tpu.core_type<tc>} {
    %cst = arith.constant 0.000000e+00 : f32
    %0 = vector.broadcast %cst : f32 to vector<8x128xf32>
    %c0_i32 = arith.constant 0 : i32
    %1 = arith.index_cast %c0_i32 : i32 to index
    %c0 = arith.constant 0 : index
    %c0_0 = arith.constant 0 : index
    %2 = vector.load %arg0[%1, %c0, %c0_0] : memref<8x8x512xf32, #tpu.memory_space<vmem>>, vector<1x8x512xf32>
    %3 = vector.shape_cast %2 : vector<1x8x512xf32> to vector<8x512xf32>
    %4 = arith.truncf %0 : vector<8x128xf32> to vector<8x128xbf16>
    %c0_1 = arith.constant 0 : index
    %c0_2 = arith.constant 0 : index
    %5 = vector.load %arg1[%c0_1, %c0_2] : memref<128x512xbf16, #tpu.memory_space<vmem>>, vector<128x512xbf16>
    %cst_3 = arith.constant dense<0.000000e+00> : vector<8x512xf32>
    %6 = tpu.matmul %4, %5, %cst_3 {dimension_numbers = #tpu.dot_dimension_numbers<[1], [0], [0], [1], [0, 0, 1, 1], [], []>} : vector<8x128xbf16>, vector<128x512xbf16>, vector<8x512xf32> -> vector<8x512xf32>
    %7 = arith.addf %3, %6 : vector<8x512xf32>
    %8 = vector.extract_strided_slice %7 {offsets = [0, 0], sizes = [8, 384], strides = [1, 1]} : vector<8x512xf32> to vector<8x384xf32>
    %9 = arith.negf %8 : vector<8x384xf32>
    %10 = math.exp %9 : vector<8x384xf32>
    %cst_4 = arith.constant 1.000000e+00 : f32
    %11 = vector.broadcast %cst_4 : f32 to vector<8x384xf32>
    %12 = arith.addf %11, %10 : vector<8x384xf32>
    %13 = arith.divf %11, %12 : vector<8x384xf32>
    %14 = vector.extract_strided_slice %7 {offsets = [0, 384], sizes = [8, 128], strides = [1, 1]} : vector<8x512xf32> to vector<8x128xf32>
    %15 = math.tanh %14 : vector<8x128xf32>
    %16 = vector.extract_strided_slice %13 {offsets = [0, 0], sizes = [8, 128], strides = [1, 1]} : vector<8x384xf32> to vector<8x128xf32>
    %17 = vector.extract_strided_slice %13 {offsets = [0, 128], sizes = [8, 128], strides = [1, 1]} : vector<8x384xf32> to vector<8x128xf32>
    %18 = vector.extract_strided_slice %13 {offsets = [0, 256], sizes = [8, 128], strides = [1, 1]} : vector<8x384xf32> to vector<8x128xf32>
    %19 = arith.mulf %17, %0 : vector<8x128xf32>
    %20 = arith.mulf %16, %15 : vector<8x128xf32>
    %21 = arith.addf %19, %20 : vector<8x128xf32>
    %22 = math.tanh %21 : vector<8x128xf32>
    %23 = arith.mulf %18, %22 : vector<8x128xf32>
    %24 = arith.index_cast %c0_i32 : i32 to index
    %c0_5 = arith.constant 0 : index
    %c0_6 = arith.constant 0 : index
    %25 = vector.load %arg2[%24, %c0_5, %c0_6] : memref<8x8x128xf32, #tpu.memory_space<vmem>>, vector<1x8x128xf32>
    %26 = vector.shape_cast %25 : vector<1x8x128xf32> to vector<8x128xf32>
    %27 = vector.shape_cast %23 : vector<8x128xf32> to vector<1x8x128xf32>
    tpu.vector_store %arg2[%24, %c0_5, %c0_6], %27 {strides = array<i32>} : memref<8x8x128xf32, #tpu.memory_space<vmem>>, vector<1x8x128xf32>,
    %c1_i32 = arith.constant 1 : i32
    %28 = arith.index_cast %c1_i32 : i32 to index
    %c0_7 = arith.constant 0 : index
    %c0_8 = arith.constant 0 : index
    %29 = vector.load %arg0[%28, %c0_7, %c0_8] : memref<8x8x512xf32, #tpu.memory_space<vmem>>, vector<1x8x512xf32>
    %30 = vector.shape_cast %29 : vector<1x8x512xf32> to vector<8x512xf32>
    %31 = arith.truncf %23 : vector<8x128xf32> to vector<8x128xbf16>
    %c0_9 = arith.constant 0 : index
    %c0_10 = arith.constant 0 : index
    %32 = vector.load %arg1[%c0_9, %c0_10] : memref<128x512xbf16, #tpu.memory_space<vmem>>, vector<128x512xbf16>
    %cst_11 = arith.constant dense<0.000000e+00> : vector<8x512xf32>
    %33 = tpu.matmul %31, %32, %cst_11 {dimension_numbers = #tpu.dot_dimension_numbers<[1], [0], [0], [1], [0, 0, 1, 1], [], []>} : vector<8x128xbf16>, vector<128x512xbf16>, vector<8x512xf32> -> vector<8x512xf32>
    %34 = arith.addf %30, %33 : vector<8x512xf32>
    %35 = vector.extract_strided_slice %34 {offsets = [0, 0], sizes = [8, 384], strides = [1, 1]} : vector<8x512xf32> to vector<8x384xf32>
    %36 = arith.negf %35 : vector<8x384xf32>
    %37 = math.exp %36 : vector<8x384xf32>
    %cst_12 = arith.constant 1.000000e+00 : f32
    %38 = vector.broadcast %cst_12 : f32 to vector<8x384xf32>
    %39 = arith.addf %38, %37 : vector<8x384xf32>
    %40 = arith.divf %38, %39 : vector<8x384xf32>
    %41 = vector.extract_strided_slice %34 {offsets = [0, 384], sizes = [8, 128], strides = [1, 1]} : vector<8x512xf32> to vector<8x128xf32>
    %42 = math.tanh %41 : vector<8x128xf32>
    %43 = vector.extract_strided_slice %40 {offsets = [0, 0], sizes = [8, 128], strides = [1, 1]} : vector<8x384xf32> to vector<8x128xf32>
    %44 = vector.extract_strided_slice %40 {offsets = [0, 128], sizes = [8, 128], strides = [1, 1]} : vector<8x384xf32> to vector<8x128xf32>
    %45 = vector.extract_strided_slice %40 {offsets = [0, 256], sizes = [8, 128], strides = [1, 1]} : vector<8x384xf32> to vector<8x128xf32>
    %46 = arith.mulf %44, %21 : vector<8x128xf32>
    %47 = arith.mulf %43, %42 : vector<8x128xf32>
    %48 = arith.addf %46, %47 : vector<8x128xf32>
    %49 = math.tanh %48 : vector<8x128xf32>
    %50 = arith.mulf %45, %49 : vector<8x128xf32>
    %51 = arith.index_cast %c1_i32 : i32 to index
    %c0_13 = arith.constant 0 : index
    %c0_14 = arith.constant 0 : index
    %52 = vector.load %arg2[%51, %c0_13, %c0_14] : memref<8x8x128xf32, #tpu.memory_space<vmem>>, vector<1x8x128xf32>
    %53 = vector.shape_cast %52 : vector<1x8x128xf32> to vector<8x128xf32>
    %54 = vector.shape_cast %50 : vector<8x128xf32> to vector<1x8x128xf32>
    tpu.vector_store %arg2[%51, %c0_13, %c0_14], %54 {strides = array<i32>} : memref<8x8x128xf32, #tpu.memory_space<vmem>>, vector<1x8x128xf32>,
    %c2_i32 = arith.constant 2 : i32
    %55 = arith.index_cast %c2_i32 : i32 to index
    %c0_15 = arith.constant 0 : index
    %c0_16 = arith.constant 0 : index
    %56 = vector.load %arg0[%55, %c0_15, %c0_16] : memref<8x8x512xf32, #tpu.memory_space<vmem>>, vector<1x8x512xf32>
    %57 = vector.shape_cast %56 : vector<1x8x512xf32> to vector<8x512xf32>
    %58 = arith.truncf %50 : vector<8x128xf32> to vector<8x128xbf16>
    %c0_17 = arith.constant 0 : index
    %c0_18 = arith.constant 0 : index
    %59 = vector.load %arg1[%c0_17, %c0_18] : memref<128x512xbf16, #tpu.memory_space<vmem>>, vector<128x512xbf16>
    %cst_19 = arith.constant dense<0.000000e+00> : vector<8x512xf32>
    %60 = tpu.matmul %58, %59, %cst_19 {dimension_numbers = #tpu.dot_dimension_numbers<[1], [0], [0], [1], [0, 0, 1, 1], [], []>} : vector<8x128xbf16>, vector<128x512xbf16>, vector<8x512xf32> -> vector<8x512xf32>
    %61 = arith.addf %57, %60 : vector<8x512xf32>
    %62 = vector.extract_strided_slice %61 {offsets = [0, 0], sizes = [8, 384], strides = [1, 1]} : vector<8x512xf32> to vector<8x384xf32>
    %63 = arith.negf %62 : vector<8x384xf32>
    %64 = math.exp %63 : vector<8x384xf32>
    %cst_20 = arith.constant 1.000000e+00 : f32
    %65 = vector.broadcast %cst_20 : f32 to vector<8x384xf32>
    %66 = arith.addf %65, %64 : vector<8x384xf32>
    %67 = arith.divf %65, %66 : vector<8x384xf32>
    %68 = vector.extract_strided_slice %61 {offsets = [0, 384], sizes = [8, 128], strides = [1, 1]} : vector<8x512xf32> to vector<8x128xf32>
    %69 = math.tanh %68 : vector<8x128xf32>
    %70 = vector.extract_strided_slice %67 {offsets = [0, 0], sizes = [8, 128], strides = [1, 1]} : vector<8x384xf32> to vector<8x128xf32>
    %71 = vector.extract_strided_slice %67 {offsets = [0, 128], sizes = [8, 128], strides = [1, 1]} : vector<8x384xf32> to vector<8x128xf32>
    %72 = vector.extract_strided_slice %67 {offsets = [0, 256], sizes = [8, 128], strides = [1, 1]} : vector<8x384xf32> to vector<8x128xf32>
    %73 = arith.mulf %71, %48 : vector<8x128xf32>
    %74 = arith.mulf %70, %69 : vector<8x128xf32>
    %75 = arith.addf %73, %74 : vector<8x128xf32>
    %76 = math.tanh %75 : vector<8x128xf32>
    %77 = arith.mulf %72, %76 : vector<8x128xf32>
    %78 = arith.index_cast %c2_i32 : i32 to index
    %c0_21 = arith.constant 0 : index
    %c0_22 = arith.constant 0 : index
    %79 = vector.load %arg2[%78, %c0_21, %c0_22] : memref<8x8x128xf32, #tpu.memory_space<vmem>>, vector<1x8x128xf32>
    %80 = vector.shape_cast %79 : vector<1x8x128xf32> to vector<8x128xf32>
    %81 = vector.shape_cast %77 : vector<8x128xf32> to vector<1x8x128xf32>
    tpu.vector_store %arg2[%78, %c0_21, %c0_22], %81 {strides = array<i32>} : memref<8x8x128xf32, #tpu.memory_space<vmem>>, vector<1x8x128xf32>,
    %c3_i32 = arith.constant 3 : i32
    %82 = arith.index_cast %c3_i32 : i32 to index
    %c0_23 = arith.constant 0 : index
    %c0_24 = arith.constant 0 : index
    %83 = vector.load %arg0[%82, %c0_23, %c0_24] : memref<8x8x512xf32, #tpu.memory_space<vmem>>, vector<1x8x512xf32>
    %84 = vector.shape_cast %83 : vector<1x8x512xf32> to vector<8x512xf32>
    %85 = arith.truncf %77 : vector<8x128xf32> to vector<8x128xbf16>
    %c0_25 = arith.constant 0 : index
    %c0_26 = arith.constant 0 : index
    %86 = vector.load %arg1[%c0_25, %c0_26] : memref<128x512xbf16, #tpu.memory_space<vmem>>, vector<128x512xbf16>
    %cst_27 = arith.constant dense<0.000000e+00> : vector<8x512xf32>
    %87 = tpu.matmul %85, %86, %cst_27 {dimension_numbers = #tpu.dot_dimension_numbers<[1], [0], [0], [1], [0, 0, 1, 1], [], []>} : vector<8x128xbf16>, vector<128x512xbf16>, vector<8x512xf32> -> vector<8x512xf32>
    %88 = arith.addf %84, %87 : vector<8x512xf32>
    %89 = vector.extract_strided_slice %88 {offsets = [0, 0], sizes = [8, 384], strides = [1, 1]} : vector<8x512xf32> to vector<8x384xf32>
    %90 = arith.negf %89 : vector<8x384xf32>
    %91 = math.exp %90 : vector<8x384xf32>
    %cst_28 = arith.constant 1.000000e+00 : f32
    %92 = vector.broadcast %cst_28 : f32 to vector<8x384xf32>
    %93 = arith.addf %92, %91 : vector<8x384xf32>
    %94 = arith.divf %92, %93 : vector<8x384xf32>
    %95 = vector.extract_strided_slice %88 {offsets = [0, 384], sizes = [8, 128], strides = [1, 1]} : vector<8x512xf32> to vector<8x128xf32>
    %96 = math.tanh %95 : vector<8x128xf32>
    %97 = vector.extract_strided_slice %94 {offsets = [0, 0], sizes = [8, 128], strides = [1, 1]} : vector<8x384xf32> to vector<8x128xf32>
    %98 = vector.extract_strided_slice %94 {offsets = [0, 128], sizes = [8, 128], strides = [1, 1]} : vector<8x384xf32> to vector<8x128xf32>
    %99 = vector.extract_strided_slice %94 {offsets = [0, 256], sizes = [8, 128], strides = [1, 1]} : vector<8x384xf32> to vector<8x128xf32>
    %100 = arith.mulf %98, %75 : vector<8x128xf32>
    %101 = arith.mulf %97, %96 : vector<8x128xf32>
    %102 = arith.addf %100, %101 : vector<8x128xf32>
    %103 = math.tanh %102 : vector<8x128xf32>
    %104 = arith.mulf %99, %103 : vector<8x128xf32>
    %105 = arith.index_cast %c3_i32 : i32 to index
    %c0_29 = arith.constant 0 : index
    %c0_30 = arith.constant 0 : index
    %106 = vector.load %arg2[%105, %c0_29, %c0_30] : memref<8x8x128xf32, #tpu.memory_space<vmem>>, vector<1x8x128xf32>
    %107 = vector.shape_cast %106 : vector<1x8x128xf32> to vector<8x128xf32>
    %108 = vector.shape_cast %104 : vector<8x128xf32> to vector<1x8x128xf32>
    tpu.vector_store %arg2[%105, %c0_29, %c0_30], %108 {strides = array<i32>} : memref<8x8x128xf32, #tpu.memory_space<vmem>>, vector<1x8x128xf32>,
    %c4_i32 = arith.constant 4 : i32
    %109 = arith.index_cast %c4_i32 : i32 to index
    %c0_31 = arith.constant 0 : index
    %c0_32 = arith.constant 0 : index
    %110 = vector.load %arg0[%109, %c0_31, %c0_32] : memref<8x8x512xf32, #tpu.memory_space<vmem>>, vector<1x8x512xf32>
    %111 = vector.shape_cast %110 : vector<1x8x512xf32> to vector<8x512xf32>
    %112 = arith.truncf %104 : vector<8x128xf32> to vector<8x128xbf16>
    %c0_33 = arith.constant 0 : index
    %c0_34 = arith.constant 0 : index
    %113 = vector.load %arg1[%c0_33, %c0_34] : memref<128x512xbf16, #tpu.memory_space<vmem>>, vector<128x512xbf16>
    %cst_35 = arith.constant dense<0.000000e+00> : vector<8x512xf32>
    %114 = tpu.matmul %112, %113, %cst_35 {dimension_numbers = #tpu.dot_dimension_numbers<[1], [0], [0], [1], [0, 0, 1, 1], [], []>} : vector<8x128xbf16>, vector<128x512xbf16>, vector<8x512xf32> -> vector<8x512xf32>
    %115 = arith.addf %111, %114 : vector<8x512xf32>
    %116 = vector.extract_strided_slice %115 {offsets = [0, 0], sizes = [8, 384], strides = [1, 1]} : vector<8x512xf32> to vector<8x384xf32>
    %117 = arith.negf %116 : vector<8x384xf32>
    %118 = math.exp %117 : vector<8x384xf32>
    %cst_36 = arith.constant 1.000000e+00 : f32
    %119 = vector.broadcast %cst_36 : f32 to vector<8x384xf32>
    %120 = arith.addf %119, %118 : vector<8x384xf32>
    %121 = arith.divf %119, %120 : vector<8x384xf32>
    %122 = vector.extract_strided_slice %115 {offsets = [0, 384], sizes = [8, 128], strides = [1, 1]} : vector<8x512xf32> to vector<8x128xf32>
    %123 = math.tanh %122 : vector<8x128xf32>
    %124 = vector.extract_strided_slice %121 {offsets = [0, 0], sizes = [8, 128], strides = [1, 1]} : vector<8x384xf32> to vector<8x128xf32>
    %125 = vector.extract_strided_slice %121 {offsets = [0, 128], sizes = [8, 128], strides = [1, 1]} : vector<8x384xf32> to vector<8x128xf32>
    %126 = vector.extract_strided_slice %121 {offsets = [0, 256], sizes = [8, 128], strides = [1, 1]} : vector<8x384xf32> to vector<8x128xf32>
    %127 = arith.mulf %125, %102 : vector<8x128xf32>
    %128 = arith.mulf %124, %123 : vector<8x128xf32>
    %129 = arith.addf %127, %128 : vector<8x128xf32>
    %130 = math.tanh %129 : vector<8x128xf32>
    %131 = arith.mulf %126, %130 : vector<8x128xf32>
    %132 = arith.index_cast %c4_i32 : i32 to index
    %c0_37 = arith.constant 0 : index
    %c0_38 = arith.constant 0 : index
    %133 = vector.load %arg2[%132, %c0_37, %c0_38] : memref<8x8x128xf32, #tpu.memory_space<vmem>>, vector<1x8x128xf32>
    %134 = vector.shape_cast %133 : vector<1x8x128xf32> to vector<8x128xf32>
    %135 = vector.shape_cast %131 : vector<8x128xf32> to vector<1x8x128xf32>
    tpu.vector_store %arg2[%132, %c0_37, %c0_38], %135 {strides = array<i32>} : memref<8x8x128xf32, #tpu.memory_space<vmem>>, vector<1x8x128xf32>,
    %c5_i32 = arith.constant 5 : i32
    %136 = arith.index_cast %c5_i32 : i32 to index
    %c0_39 = arith.constant 0 : index
    %c0_40 = arith.constant 0 : index
    %137 = vector.load %arg0[%136, %c0_39, %c0_40] : memref<8x8x512xf32, #tpu.memory_space<vmem>>, vector<1x8x512xf32>
    %138 = vector.shape_cast %137 : vector<1x8x512xf32> to vector<8x512xf32>
    %139 = arith.truncf %131 : vector<8x128xf32> to vector<8x128xbf16>
    %c0_41 = arith.constant 0 : index
    %c0_42 = arith.constant 0 : index
    %140 = vector.load %arg1[%c0_41, %c0_42] : memref<128x512xbf16, #tpu.memory_space<vmem>>, vector<128x512xbf16>
    %cst_43 = arith.constant dense<0.000000e+00> : vector<8x512xf32>
    %141 = tpu.matmul %139, %140, %cst_43 {dimension_numbers = #tpu.dot_dimension_numbers<[1], [0], [0], [1], [0, 0, 1, 1], [], []>} : vector<8x128xbf16>, vector<128x512xbf16>, vector<8x512xf32> -> vector<8x512xf32>
    %142 = arith.addf %138, %141 : vector<8x512xf32>
    %143 = vector.extract_strided_slice %142 {offsets = [0, 0], sizes = [8, 384], strides = [1, 1]} : vector<8x512xf32> to vector<8x384xf32>
    %144 = arith.negf %143 : vector<8x384xf32>
    %145 = math.exp %144 : vector<8x384xf32>
    %cst_44 = arith.constant 1.000000e+00 : f32
    %146 = vector.broadcast %cst_44 : f32 to vector<8x384xf32>
    %147 = arith.addf %146, %145 : vector<8x384xf32>
    %148 = arith.divf %146, %147 : vector<8x384xf32>
    %149 = vector.extract_strided_slice %142 {offsets = [0, 384], sizes = [8, 128], strides = [1, 1]} : vector<8x512xf32> to vector<8x128xf32>
    %150 = math.tanh %149 : vector<8x128xf32>
    %151 = vector.extract_strided_slice %148 {offsets = [0, 0], sizes = [8, 128], strides = [1, 1]} : vector<8x384xf32> to vector<8x128xf32>
    %152 = vector.extract_strided_slice %148 {offsets = [0, 128], sizes = [8, 128], strides = [1, 1]} : vector<8x384xf32> to vector<8x128xf32>
    %153 = vector.extract_strided_slice %148 {offsets = [0, 256], sizes = [8, 128], strides = [1, 1]} : vector<8x384xf32> to vector<8x128xf32>
    %154 = arith.mulf %152, %129 : vector<8x128xf32>
    %155 = arith.mulf %151, %150 : vector<8x128xf32>
    %156 = arith.addf %154, %155 : vector<8x128xf32>
    %157 = math.tanh %156 : vector<8x128xf32>
    %158 = arith.mulf %153, %157 : vector<8x128xf32>
    %159 = arith.index_cast %c5_i32 : i32 to index
    %c0_45 = arith.constant 0 : index
    %c0_46 = arith.constant 0 : index
    %160 = vector.load %arg2[%159, %c0_45, %c0_46] : memref<8x8x128xf32, #tpu.memory_space<vmem>>, vector<1x8x128xf32>
    %161 = vector.shape_cast %160 : vector<1x8x128xf32> to vector<8x128xf32>
    %162 = vector.shape_cast %158 : vector<8x128xf32> to vector<1x8x128xf32>
    tpu.vector_store %arg2[%159, %c0_45, %c0_46], %162 {strides = array<i32>} : memref<8x8x128xf32, #tpu.memory_space<vmem>>, vector<1x8x128xf32>,
    %c6_i32 = arith.constant 6 : i32
    %163 = arith.index_cast %c6_i32 : i32 to index
    %c0_47 = arith.constant 0 : index
    %c0_48 = arith.constant 0 : index
    %164 = vector.load %arg0[%163, %c0_47, %c0_48] : memref<8x8x512xf32, #tpu.memory_space<vmem>>, vector<1x8x512xf32>
    %165 = vector.shape_cast %164 : vector<1x8x512xf32> to vector<8x512xf32>
    %166 = arith.truncf %158 : vector<8x128xf32> to vector<8x128xbf16>
    %c0_49 = arith.constant 0 : index
    %c0_50 = arith.constant 0 : index
    %167 = vector.load %arg1[%c0_49, %c0_50] : memref<128x512xbf16, #tpu.memory_space<vmem>>, vector<128x512xbf16>
    %cst_51 = arith.constant dense<0.000000e+00> : vector<8x512xf32>
    %168 = tpu.matmul %166, %167, %cst_51 {dimension_numbers = #tpu.dot_dimension_numbers<[1], [0], [0], [1], [0, 0, 1, 1], [], []>} : vector<8x128xbf16>, vector<128x512xbf16>, vector<8x512xf32> -> vector<8x512xf32>
    %169 = arith.addf %165, %168 : vector<8x512xf32>
    %170 = vector.extract_strided_slice %169 {offsets = [0, 0], sizes = [8, 384], strides = [1, 1]} : vector<8x512xf32> to vector<8x384xf32>
    %171 = arith.negf %170 : vector<8x384xf32>
    %172 = math.exp %171 : vector<8x384xf32>
    %cst_52 = arith.constant 1.000000e+00 : f32
    %173 = vector.broadcast %cst_52 : f32 to vector<8x384xf32>
    %174 = arith.addf %173, %172 : vector<8x384xf32>
    %175 = arith.divf %173, %174 : vector<8x384xf32>
    %176 = vector.extract_strided_slice %169 {offsets = [0, 384], sizes = [8, 128], strides = [1, 1]} : vector<8x512xf32> to vector<8x128xf32>
    %177 = math.tanh %176 : vector<8x128xf32>
    %178 = vector.extract_strided_slice %175 {offsets = [0, 0], sizes = [8, 128], strides = [1, 1]} : vector<8x384xf32> to vector<8x128xf32>
    %179 = vector.extract_strided_slice %175 {offsets = [0, 128], sizes = [8, 128], strides = [1, 1]} : vector<8x384xf32> to vector<8x128xf32>
    %180 = vector.extract_strided_slice %175 {offsets = [0, 256], sizes = [8, 128], strides = [1, 1]} : vector<8x384xf32> to vector<8x128xf32>
    %181 = arith.mulf %179, %156 : vector<8x128xf32>
    %182 = arith.mulf %178, %177 : vector<8x128xf32>
    %183 = arith.addf %181, %182 : vector<8x128xf32>
    %184 = math.tanh %183 : vector<8x128xf32>
    %185 = arith.mulf %180, %184 : vector<8x128xf32>
    %186 = arith.index_cast %c6_i32 : i32 to index
    %c0_53 = arith.constant 0 : index
    %c0_54 = arith.constant 0 : index
    %187 = vector.load %arg2[%186, %c0_53, %c0_54] : memref<8x8x128xf32, #tpu.memory_space<vmem>>, vector<1x8x128xf32>
    %188 = vector.shape_cast %187 : vector<1x8x128xf32> to vector<8x128xf32>
    %189 = vector.shape_cast %185 : vector<8x128xf32> to vector<1x8x128xf32>
    tpu.vector_store %arg2[%186, %c0_53, %c0_54], %189 {strides = array<i32>} : memref<8x8x128xf32, #tpu.memory_space<vmem>>, vector<1x8x128xf32>,
    %c7_i32 = arith.constant 7 : i32
    %190 = arith.index_cast %c7_i32 : i32 to index
    %c0_55 = arith.constant 0 : index
    %c0_56 = arith.constant 0 : index
    %191 = vector.load %arg0[%190, %c0_55, %c0_56] : memref<8x8x512xf32, #tpu.memory_space<vmem>>, vector<1x8x512xf32>
    %192 = vector.shape_cast %191 : vector<1x8x512xf32> to vector<8x512xf32>
    %193 = arith.truncf %185 : vector<8x128xf32> to vector<8x128xbf16>
    %c0_57 = arith.constant 0 : index
    %c0_58 = arith.constant 0 : index
    %194 = vector.load %arg1[%c0_57, %c0_58] : memref<128x512xbf16, #tpu.memory_space<vmem>>, vector<128x512xbf16>
    %cst_59 = arith.constant dense<0.000000e+00> : vector<8x512xf32>
    %195 = tpu.matmul %193, %194, %cst_59 {dimension_numbers = #tpu.dot_dimension_numbers<[1], [0], [0], [1], [0, 0, 1, 1], [], []>} : vector<8x128xbf16>, vector<128x512xbf16>, vector<8x512xf32> -> vector<8x512xf32>
    %196 = arith.addf %192, %195 : vector<8x512xf32>
    %197 = vector.extract_strided_slice %196 {offsets = [0, 0], sizes = [8, 384], strides = [1, 1]} : vector<8x512xf32> to vector<8x384xf32>
    %198 = arith.negf %197 : vector<8x384xf32>
    %199 = math.exp %198 : vector<8x384xf32>
    %cst_60 = arith.constant 1.000000e+00 : f32
    %200 = vector.broadcast %cst_60 : f32 to vector<8x384xf32>
    %201 = arith.addf %200, %199 : vector<8x384xf32>
    %202 = arith.divf %200, %201 : vector<8x384xf32>
    %203 = vector.extract_strided_slice %196 {offsets = [0, 384], sizes = [8, 128], strides = [1, 1]} : vector<8x512xf32> to vector<8x128xf32>
    %204 = math.tanh %203 : vector<8x128xf32>
    %205 = vector.extract_strided_slice %202 {offsets = [0, 0], sizes = [8, 128], strides = [1, 1]} : vector<8x384xf32> to vector<8x128xf32>
    %206 = vector.extract_strided_slice %202 {offsets = [0, 128], sizes = [8, 128], strides = [1, 1]} : vector<8x384xf32> to vector<8x128xf32>
    %207 = vector.extract_strided_slice %202 {offsets = [0, 256], sizes = [8, 128], strides = [1, 1]} : vector<8x384xf32> to vector<8x128xf32>
    %208 = arith.mulf %206, %183 : vector<8x128xf32>
    %209 = arith.mulf %205, %204 : vector<8x128xf32>
    %210 = arith.addf %208, %209 : vector<8x128xf32>
    %211 = math.tanh %210 : vector<8x128xf32>
    %212 = arith.mulf %207, %211 : vector<8x128xf32>
    %213 = arith.index_cast %c7_i32 : i32 to index
    %c0_61 = arith.constant 0 : index
    %c0_62 = arith.constant 0 : index
    %214 = vector.load %arg2[%213, %c0_61, %c0_62] : memref<8x8x128xf32, #tpu.memory_space<vmem>>, vector<1x8x128xf32>
    %215 = vector.shape_cast %214 : vector<1x8x128xf32> to vector<8x128xf32>
    %216 = vector.shape_cast %212 : vector<8x128xf32> to vector<1x8x128xf32>
    tpu.vector_store %arg2[%213, %c0_61, %c0_62], %216 {strides = array<i32>} : memref<8x8x128xf32, #tpu.memory_space<vmem>>, vector<1x8x128xf32>,
    %c8_i32 = arith.constant 8 : i32
    return
  }
}

</mosaic_0001>

<llo_original>
// kernel: temporal_lstm_layer.2
$region0: #{temporal_lstm_layer.2}
  #allocation0 [shape = 'u32[]', space=smem, size = 0x4, offset = 0x4, fixed_abs, tag = 'smem constant byte address 0x4 - core index']
  #allocation1 [shape = 'u32[72,128]{1,0:T(1,128)}', space=vmem, size = 0x9000, scoped, tag = 'internal scratch']
  %s0 = inlined_call_operand.vmem [shape: f32[8,8,512], index: 0, kind: input, shape index: {}]
  %s1 = inlined_call_operand.vmem [shape: bf16[128,512], index: 1, kind: input, shape index: {}]
  %s2 = inlined_call_operand.vmem [shape: f32[8,8,128], index: 2, kind: output, shape index: {}]
  %s3 = sld [smem:[#allocation0]]
  $region18: #{temporal_lstm_layer.2} parent=0
    _
  %s5 = ssub.s32 1, %s3
  %s6 = scalar_select 0, %s5, %s3
  // Predicated region
  $region2: #{temporal_lstm_layer.2} parent=0 // pred_check
    _
  $region3: #{temporal_lstm_layer.2} parent=0 // pred_check_branch
    %8 = sbr.rel (0) target = $region5
  $region4: #{temporal_lstm_layer.2} parent=0 // pred_region
    _
  $region5: #{temporal_lstm_layer.2} parent=0 // pred_fallthru
    _
  // Predicated region
  $region6: #{temporal_lstm_layer.2} parent=0 // pred_check
    _
  $region7: #{temporal_lstm_layer.2} parent=0 // pred_check_branch
    %10 = sbr.rel (0) target = $region9
  $region8: #{temporal_lstm_layer.2} parent=0 // pred_region
    _
  $region9: #{temporal_lstm_layer.2} parent=0 // pred_fallthru
    _
  %v12 = vld [vmem:[%s0] sm:$0xff]
  %v13 = vld [vmem:[%s0 + $0x8] sm:$0xff]
  %v14 = vld [vmem:[%s0 + $0x10] sm:$0xff]
  %v15 = vld [vmem:[%s0 + $0x18] sm:$0xff]
  %v16 = vld [vmem:[%s1] sm:$0xff]
  %v17 = vld [vmem:[%s1 + $0x8] sm:$0xff]
  %v18 = vld [vmem:[%s1 + $0x10] sm:$0xff]
  %v19 = vld [vmem:[%s1 + $0x18] sm:$0xff]
  %v20 = vld [vmem:[%s1 + $0x20] sm:$0xff]
  %v21 = vld [vmem:[%s1 + $0x28] sm:$0xff]
  %v22 = vld [vmem:[%s1 + $0x30] sm:$0xff]
  %v23 = vld [vmem:[%s1 + $0x38] sm:$0xff]
  %v24 = vld [vmem:[%s1 + $0x40] sm:$0xff]
  %v25 = vld [vmem:[%s1 + $0x48] sm:$0xff]
  %v26 = vld [vmem:[%s1 + $0x50] sm:$0xff]
  %v27 = vld [vmem:[%s1 + $0x58] sm:$0xff]
  %v28 = vld [vmem:[%s1 + $0x60] sm:$0xff]
  %v29 = vld [vmem:[%s1 + $0x68] sm:$0xff]
  %v30 = vld [vmem:[%s1 + $0x70] sm:$0xff]
  %v31 = vld [vmem:[%s1 + $0x78] sm:$0xff]
  %v32 = vld [vmem:[%s1 + $0x80] sm:$0xff]
  %v33 = vld [vmem:[%s1 + $0x88] sm:$0xff]
  %v34 = vld [vmem:[%s1 + $0x90] sm:$0xff]
  %v35 = vld [vmem:[%s1 + $0x98] sm:$0xff]
  %v36 = vld [vmem:[%s1 + $0xa0] sm:$0xff]
  %v37 = vld [vmem:[%s1 + $0xa8] sm:$0xff]
  %v38 = vld [vmem:[%s1 + $0xb0] sm:$0xff]
  %v39 = vld [vmem:[%s1 + $0xb8] sm:$0xff]
  %v40 = vld [vmem:[%s1 + $0xc0] sm:$0xff]
  %v41 = vld [vmem:[%s1 + $0xc8] sm:$0xff]
  %v42 = vld [vmem:[%s1 + $0xd0] sm:$0xff]
  %v43 = vld [vmem:[%s1 + $0xd8] sm:$0xff]
  %v44 = vld [vmem:[%s1 + $0xe0] sm:$0xff]
  %v45 = vld [vmem:[%s1 + $0xe8] sm:$0xff]
  %v46 = vld [vmem:[%s1 + $0xf0] sm:$0xff]
  %v47 = vld [vmem:[%s1 + $0xf8] sm:$0xff]
  %v80 = vunpack.c.l.b16 %v16
  %v81 = vunpack.c.h.b16 %v16
  %v82 = vunpack.c.l.b16 %v17
  %v83 = vunpack.c.h.b16 %v17
  %v84 = vunpack.c.l.b16 %v18
  %v85 = vunpack.c.h.b16 %v18
  %v86 = vunpack.c.l.b16 %v19
  %v87 = vunpack.c.h.b16 %v19
  %v88 = vunpack.c.l.b16 %v20
  %v89 = vunpack.c.h.b16 %v20
  %v90 = vunpack.c.l.b16 %v21
  %v91 = vunpack.c.h.b16 %v21
  %v92 = vunpack.c.l.b16 %v22
  %v93 = vunpack.c.h.b16 %v22
  %v94 = vunpack.c.l.b16 %v23
  %v95 = vunpack.c.h.b16 %v23
  %v96 = vunpack.c.l.b16 %v24
  %v97 = vunpack.c.h.b16 %v24
  %v98 = vunpack.c.l.b16 %v25
  %v99 = vunpack.c.h.b16 %v25
  %v100 = vunpack.c.l.b16 %v26
  %v101 = vunpack.c.h.b16 %v26
  %v102 = vunpack.c.l.b16 %v27
  %v103 = vunpack.c.h.b16 %v27
  %v104 = vunpack.c.l.b16 %v28
  %v105 = vunpack.c.h.b16 %v28
  %v106 = vunpack.c.l.b16 %v29
  %v107 = vunpack.c.h.b16 %v29
  %v108 = vunpack.c.l.b16 %v30
  %v109 = vunpack.c.h.b16 %v30
  %v110 = vunpack.c.l.b16 %v31
  %v111 = vunpack.c.h.b16 %v31
  %v112 = vunpack.c.l.b16 %v32
  %v113 = vunpack.c.h.b16 %v32
  %v114 = vunpack.c.l.b16 %v33
  %v115 = vunpack.c.h.b16 %v33
  %v116 = vunpack.c.l.b16 %v34
  %v117 = vunpack.c.h.b16 %v34
  %v118 = vunpack.c.l.b16 %v35
  %v119 = vunpack.c.h.b16 %v35
  %v120 = vunpack.c.l.b16 %v36
  %v121 = vunpack.c.h.b16 %v36
  %v122 = vunpack.c.l.b16 %v37
  %v123 = vunpack.c.h.b16 %v37
  %v124 = vunpack.c.l.b16 %v38
  %v125 = vunpack.c.h.b16 %v38
  %v126 = vunpack.c.l.b16 %v39
  %v127 = vunpack.c.h.b16 %v39
  %v128 = vunpack.c.l.b16 %v40
  %v129 = vunpack.c.h.b16 %v40
  %v130 = vunpack.c.l.b16 %v41
  %v131 = vunpack.c.h.b16 %v41
  %v132 = vunpack.c.l.b16 %v42
  %v133 = vunpack.c.h.b16 %v42
  %v134 = vunpack.c.l.b16 %v43
  %v135 = vunpack.c.h.b16 %v43
  %v136 = vunpack.c.l.b16 %v44
  %v137 = vunpack.c.h.b16 %v44
  %v138 = vunpack.c.l.b16 %v45
  %v139 = vunpack.c.h.b16 %v45
  %v140 = vunpack.c.l.b16 %v46
  %v141 = vunpack.c.h.b16 %v46
  %v142 = vunpack.c.l.b16 %v47
  %v143 = vunpack.c.h.b16 %v47
  %v144 = vpack.c.b16 %v84, %v80
  %v145 = vpack.c.b16 %v85, %v81
  %v146 = vpack.c.b16 %v86, %v82
  %v147 = vpack.c.b16 %v87, %v83
  %v148 = vpack.c.b16 %v92, %v88
  %v149 = vpack.c.b16 %v93, %v89
  %v150 = vpack.c.b16 %v94, %v90
  %v151 = vpack.c.b16 %v95, %v91
  %v152 = vpack.c.b16 %v100, %v96
  %v153 = vpack.c.b16 %v101, %v97
  %v154 = vpack.c.b16 %v102, %v98
  %v155 = vpack.c.b16 %v103, %v99
  %v156 = vpack.c.b16 %v108, %v104
  %v157 = vpack.c.b16 %v109, %v105
  %v158 = vpack.c.b16 %v110, %v106
  %v159 = vpack.c.b16 %v111, %v107
  %v160 = vpack.c.b16 %v116, %v112
  %v161 = vpack.c.b16 %v117, %v113
  %v162 = vpack.c.b16 %v118, %v114
  %v163 = vpack.c.b16 %v119, %v115
  %v164 = vpack.c.b16 %v124, %v120
  %v165 = vpack.c.b16 %v125, %v121
  %v166 = vpack.c.b16 %v126, %v122
  %v167 = vpack.c.b16 %v127, %v123
  %v168 = vpack.c.b16 %v132, %v128
  %v169 = vpack.c.b16 %v133, %v129
  %v170 = vpack.c.b16 %v134, %v130
  %v171 = vpack.c.b16 %v135, %v131
  %v172 = vpack.c.b16 %v140, %v136
  %v173 = vpack.c.b16 %v141, %v137
  %v174 = vpack.c.b16 %v142, %v138
  %v175 = vpack.c.b16 %v143, %v139
  %208 = vmatpush.bf16.msra.mxu0 %v172
  %209 = vmatpush.bf16.msra.mxu0 %v168
  %210 = vmatpush.bf16.msra.mxu0 %v164
  %211 = vmatpush.bf16.msra.mxu0 %v160
  %212 = vmatpush.bf16.msra.mxu0 %v156
  %213 = vmatpush.bf16.msra.mxu0 %v152
  %214 = vmatpush.bf16.msra.mxu0 %v148
  %215 = vmatpush.bf16.msra.mxu0 %v144
  %216 = vmatmul.bf16.gmra.mxu0 0
  %v217 = vpop.f32.mrf.mxu0
  %v218 = vadd.f32 0.0, %v217
  %v219 = vpop.f32.mrf.mxu0
  %220 = vdwg.mxu0
  %221 = vmatpush.bf16.msra.mxu0 %v173
  %222 = vmatpush.bf16.msra.mxu0 %v169
  %223 = vmatpush.bf16.msra.mxu0 %v165
  %224 = vmatpush.bf16.msra.mxu0 %v161
  %225 = vmatpush.bf16.msra.mxu0 %v157
  %226 = vmatpush.bf16.msra.mxu0 %v153
  %227 = vmatpush.bf16.msra.mxu0 %v149
  %228 = vmatpush.bf16.msra.mxu0 %v145
  %229 = vmatmul.bf16.gmra.mxu0 0
  %v230 = vpop.f32.mrf.mxu0
  %v231 = vadd.f32 0.0, %v230
  %v232 = vpop.f32.mrf.mxu0
  %233 = vdwg.mxu0
  %234 = vmatpush.bf16.msra.mxu0 %v174
  %235 = vmatpush.bf16.msra.mxu0 %v170
  %236 = vmatpush.bf16.msra.mxu0 %v166
  %237 = vmatpush.bf16.msra.mxu0 %v162
  %238 = vmatpush.bf16.msra.mxu0 %v158
  %239 = vmatpush.bf16.msra.mxu0 %v154
  %240 = vmatpush.bf16.msra.mxu0 %v150
  %241 = vmatpush.bf16.msra.mxu0 %v146
  %242 = vmatmul.bf16.gmra.mxu0 0
  %v243 = vpop.f32.mrf.mxu0
  %v244 = vadd.f32 0.0, %v243
  %v245 = vpop.f32.mrf.mxu0
  %246 = vdwg.mxu0
  %247 = vmatpush.bf16.msra.mxu0 %v175
  %248 = vmatpush.bf16.msra.mxu0 %v171
  %249 = vmatpush.bf16.msra.mxu0 %v167
  %250 = vmatpush.bf16.msra.mxu0 %v163
  %251 = vmatpush.bf16.msra.mxu0 %v159
  %252 = vmatpush.bf16.msra.mxu0 %v155
  %253 = vmatpush.bf16.msra.mxu0 %v151
  %254 = vmatpush.bf16.msra.mxu0 %v147
  %255 = vmatmul.bf16.gmra.mxu0 0
  %v256 = vpop.f32.mrf.mxu0
  %v257 = vadd.f32 0.0, %v256
  %v258 = vpop.f32.mrf.mxu0
  %259 = vdwg.mxu0
  %v260 = vadd.f32 %v12, %v218
  %v261 = vadd.f32 %v13, %v231
  %v262 = vadd.f32 %v14, %v244
  %v263 = vadd.f32 %v15, %v257
  %v264 = vxor.u32 %v260, 2147483648
  %v265 = vxor.u32 %v261, 2147483648
  %v266 = vxor.u32 %v262, 2147483648
  %v267 = vmul.f32 %v264, 1.442695
  %v268 = vpow.pop %v267
  %v269 = vmul.f32 %v265, 1.442695
  %v270 = vpow.pop %v269
  %v271 = vmul.f32 %v266, 1.442695
  %v272 = vpow.pop %v271
  %v273 = vadd.f32 %v268, 1.0
  %v274 = vadd.f32 %v270, 1.0
  %v275 = vadd.f32 %v272, 1.0
  %v276 = vrcp.pop %v273
  %v277 = vmul.f32 %v273, %v276
  %v278 = vsub.f32 1.0, %v277
  %v279 = vmul.f32 %v276, %v278
  %v280 = vadd.f32 %v276, %v279
  %vm281 = vweird.f32 %v273
  %vm282 = vweird.f32 %v276
  %vm283 = vmor %vm281, %vm282
  %v284 = vsel %vm283, %v276, %v280
  %v285 = vand.u32 2147483647, %v273
  %vm286 = vcmp.eq.f32.partialorder %v285, 8.507059e+37
  %v287 = vand.u32 %v273, 2147483648
  %v288 = vor.u32 1.1754944e-38, %v287
  %v289 = vsel %vm286, %v288, %v284
  %v290 = vmul.f32 1.0, %v289
  %v291 = vrcp.pop %v274
  %v292 = vmul.f32 %v274, %v291
  %v293 = vsub.f32 1.0, %v292
  %v294 = vmul.f32 %v291, %v293
  %v295 = vadd.f32 %v291, %v294
  %vm296 = vweird.f32 %v274
  %vm297 = vweird.f32 %v291
  %vm298 = vmor %vm296, %vm297
  %v299 = vsel %vm298, %v291, %v295
  %v300 = vand.u32 2147483647, %v274
  %vm301 = vcmp.eq.f32.partialorder %v300, 8.507059e+37
  %v302 = vand.u32 %v274, 2147483648
  %v303 = vor.u32 1.1754944e-38, %v302
  %v304 = vsel %vm301, %v303, %v299
  %v305 = vmul.f32 1.0, %v304
  %v306 = vrcp.pop %v275
  %v307 = vmul.f32 %v275, %v306
  %v308 = vsub.f32 1.0, %v307
  %v309 = vmul.f32 %v306, %v308
  %v310 = vadd.f32 %v306, %v309
  %vm311 = vweird.f32 %v275
  %vm312 = vweird.f32 %v306
  %vm313 = vmor %vm311, %vm312
  %v314 = vsel %vm313, %v306, %v310
  %v315 = vand.u32 2147483647, %v275
  %vm316 = vcmp.eq.f32.partialorder %v315, 8.507059e+37
  %v317 = vand.u32 %v275, 2147483648
  %v318 = vor.u32 1.1754944e-38, %v317
  %v319 = vsel %vm316, %v318, %v314
  %v320 = vmul.f32 1.0, %v319
  %v321 = vtanh.pop %v263
  %v322 = vmul.f32 %v305, 0.0
  %v323 = vmul.f32 %v290, %v321
  %v324 = vadd.f32 %v322, %v323
  %v325 = vtanh.pop %v324
  %v326 = vmul.f32 %v320, %v325
  %327 = vst [vmem:[%s2] sm:$0xff] %v326
  %s328 = scalar_lea.vmem %s0, 32
  %v329 = vld [vmem:[%s328] sm:$0xff]
  %v330 = vld [vmem:[%s328 + $0x8] sm:$0xff]
  %v331 = vld [vmem:[%s328 + $0x10] sm:$0xff]
  %v332 = vld [vmem:[%s328 + $0x18] sm:$0xff]
  %v333 = vpack.c.bf16 %v326, %v326
  %v334 = vld [vmem:[%s1] sm:$0xff]
  %v335 = vld [vmem:[%s1 + $0x8] sm:$0xff]
  %v336 = vld [vmem:[%s1 + $0x10] sm:$0xff]
  %v337 = vld [vmem:[%s1 + $0x18] sm:$0xff]
  %v338 = vld [vmem:[%s1 + $0x20] sm:$0xff]
  %v339 = vld [vmem:[%s1 + $0x28] sm:$0xff]
  %v340 = vld [vmem:[%s1 + $0x30] sm:$0xff]
  %v341 = vld [vmem:[%s1 + $0x38] sm:$0xff]
  %v342 = vld [vmem:[%s1 + $0x40] sm:$0xff]
  %v343 = vld [vmem:[%s1 + $0x48] sm:$0xff]
  %v344 = vld [vmem:[%s1 + $0x50] sm:$0xff]
  %v345 = vld [vmem:[%s1 + $0x58] sm:$0xff]
  %v346 = vld [vmem:[%s1 + $0x60] sm:$0xff]
  %v347 = vld [vmem:[%s1 + $0x68] sm:$0xff]
  %v348 = vld [vmem:[%s1 + $0x70] sm:$0xff]
  %v349 = vld [vmem:[%s1 + $0x78] sm:$0xff]
  %v350 = vld [vmem:[%s1 + $0x80] sm:$0xff]
  %v351 = vld [vmem:[%s1 + $0x88] sm:$0xff]
  %v352 = vld [vmem:[%s1 + $0x90] sm:$0xff]
  %v353 = vld [vmem:[%s1 + $0x98] sm:$0xff]
  %v354 = vld [vmem:[%s1 + $0xa0] sm:$0xff]
  %v355 = vld [vmem:[%s1 + $0xa8] sm:$0xff]
  %v356 = vld [vmem:[%s1 + $0xb0] sm:$0xff]
  %v357 = vld [vmem:[%s1 + $0xb8] sm:$0xff]
  %v358 = vld [vmem:[%s1 + $0xc0] sm:$0xff]
  %v359 = vld [vmem:[%s1 + $0xc8] sm:$0xff]
  %v360 = vld [vmem:[%s1 + $0xd0] sm:$0xff]
  %v361 = vld [vmem:[%s1 + $0xd8] sm:$0xff]
  %v362 = vld [vmem:[%s1 + $0xe0] sm:$0xff]
  %v363 = vld [vmem:[%s1 + $0xe8] sm:$0xff]
  %v364 = vld [vmem:[%s1 + $0xf0] sm:$0xff]
  %v365 = vld [vmem:[%s1 + $0xf8] sm:$0xff]
  %v398 = vunpack.c.l.b16 %v334
  %v399 = vunpack.c.h.b16 %v334
  %v400 = vunpack.c.l.b16 %v335
  %v401 = vunpack.c.h.b16 %v335
  %v402 = vunpack.c.l.b16 %v336
  %v403 = vunpack.c.h.b16 %v336
  %v404 = vunpack.c.l.b16 %v337
  %v405 = vunpack.c.h.b16 %v337
  %v406 = vunpack.c.l.b16 %v338
  %v407 = vunpack.c.h.b16 %v338
  %v408 = vunpack.c.l.b16 %v339
  %v409 = vunpack.c.h.b16 %v339
  %v410 = vunpack.c.l.b16 %v340
  %v411 = vunpack.c.h.b16 %v340
  %v412 = vunpack.c.l.b16 %v341
  %v413 = vunpack.c.h.b16 %v341
  %v414 = vunpack.c.l.b16 %v342
  %v415 = vunpack.c.h.b16 %v342
  %v416 = vunpack.c.l.b16 %v343
  %v417 = vunpack.c.h.b16 %v343
  %v418 = vunpack.c.l.b16 %v344
  %v419 = vunpack.c.h.b16 %v344
  %v420 = vunpack.c.l.b16 %v345
  %v421 = vunpack.c.h.b16 %v345
  %v422 = vunpack.c.l.b16 %v346
  %v423 = vunpack.c.h.b16 %v346
  %v424 = vunpack.c.l.b16 %v347
  %v425 = vunpack.c.h.b16 %v347
  %v426 = vunpack.c.l.b16 %v348
  %v427 = vunpack.c.h.b16 %v348
  %v428 = vunpack.c.l.b16 %v349
  %v429 = vunpack.c.h.b16 %v349
  %v430 = vunpack.c.l.b16 %v350
  %v431 = vunpack.c.h.b16 %v350
  %v432 = vunpack.c.l.b16 %v351
  %v433 = vunpack.c.h.b16 %v351
  %v434 = vunpack.c.l.b16 %v352
  %v435 = vunpack.c.h.b16 %v352
  %v436 = vunpack.c.l.b16 %v353
  %v437 = vunpack.c.h.b16 %v353
  %v438 = vunpack.c.l.b16 %v354
  %v439 = vunpack.c.h.b16 %v354
  %v440 = vunpack.c.l.b16 %v355
  %v441 = vunpack.c.h.b16 %v355
  %v442 = vunpack.c.l.b16 %v356
  %v443 = vunpack.c.h.b16 %v356
  %v444 = vunpack.c.l.b16 %v357
  %v445 = vunpack.c.h.b16 %v357
  %v446 = vunpack.c.l.b16 %v358
  %v447 = vunpack.c.h.b16 %v358
  %v448 = vunpack.c.l.b16 %v359
  %v449 = vunpack.c.h.b16 %v359
  %v450 = vunpack.c.l.b16 %v360
  %v451 = vunpack.c.h.b16 %v360
  %v452 = vunpack.c.l.b16 %v361
  %v453 = vunpack.c.h.b16 %v361
  %v454 = vunpack.c.l.b16 %v362
  %v455 = vunpack.c.h.b16 %v362
  %v456 = vunpack.c.l.b16 %v363
  %v457 = vunpack.c.h.b16 %v363
  %v458 = vunpack.c.l.b16 %v364
  %v459 = vunpack.c.h.b16 %v364
  %v460 = vunpack.c.l.b16 %v365
  %v461 = vunpack.c.h.b16 %v365
  %v462 = vpack.c.b16 %v402, %v398
  %v463 = vpack.c.b16 %v403, %v399
  %v464 = vpack.c.b16 %v404, %v400
  %v465 = vpack.c.b16 %v405, %v401
  %v466 = vpack.c.b16 %v410, %v406
  %v467 = vpack.c.b16 %v411, %v407
  %v468 = vpack.c.b16 %v412, %v408
  %v469 = vpack.c.b16 %v413, %v409
  %v470 = vpack.c.b16 %v418, %v414
  %v471 = vpack.c.b16 %v419, %v415
  %v472 = vpack.c.b16 %v420, %v416
  %v473 = vpack.c.b16 %v421, %v417
  %v474 = vpack.c.b16 %v426, %v422
  %v475 = vpack.c.b16 %v427, %v423
  %v476 = vpack.c.b16 %v428, %v424
  %v477 = vpack.c.b16 %v429, %v425
  %v478 = vpack.c.b16 %v434, %v430
  %v479 = vpack.c.b16 %v435, %v431
  %v480 = vpack.c.b16 %v436, %v432
  %v481 = vpack.c.b16 %v437, %v433
  %v482 = vpack.c.b16 %v442, %v438
  %v483 = vpack.c.b16 %v443, %v439
  %v484 = vpack.c.b16 %v444, %v440
  %v485 = vpack.c.b16 %v445, %v441
  %v486 = vpack.c.b16 %v450, %v446
  %v487 = vpack.c.b16 %v451, %v447
  %v488 = vpack.c.b16 %v452, %v448
  %v489 = vpack.c.b16 %v453, %v449
  %v490 = vpack.c.b16 %v458, %v454
  %v491 = vpack.c.b16 %v459, %v455
  %v492 = vpack.c.b16 %v460, %v456
  %v493 = vpack.c.b16 %v461, %v457
  %526 = vmatpush.bf16.msra.mxu0 %v490
  %527 = vmatpush.bf16.msra.mxu0 %v486
  %528 = vmatpush.bf16.msra.mxu0 %v482
  %529 = vmatpush.bf16.msra.mxu0 %v478
  %530 = vmatpush.bf16.msra.mxu0 %v474
  %531 = vmatpush.bf16.msra.mxu0 %v470
  %532 = vmatpush.bf16.msra.mxu0 %v466
  %533 = vmatpush.bf16.msra.mxu0 %v462
  %534 = vmatmul.bf16.gmra.mxu0 %v333
  %v535 = vpop.f32.mrf.mxu0
  %v536 = vadd.f32 0.0, %v535
  %v537 = vpop.f32.mrf.mxu0
  %538 = vdwg.mxu0
  %539 = vmatpush.bf16.msra.mxu0 %v491
  %540 = vmatpush.bf16.msra.mxu0 %v487
  %541 = vmatpush.bf16.msra.mxu0 %v483
  %542 = vmatpush.bf16.msra.mxu0 %v479
  %543 = vmatpush.bf16.msra.mxu0 %v475
  %544 = vmatpush.bf16.msra.mxu0 %v471
  %545 = vmatpush.bf16.msra.mxu0 %v467
  %546 = vmatpush.bf16.msra.mxu0 %v463
  %547 = vmatmul.bf16.gmra.mxu0 %v333
  %v548 = vpop.f32.mrf.mxu0
  %v549 = vadd.f32 0.0, %v548
  %v550 = vpop.f32.mrf.mxu0
  %551 = vdwg.mxu0
  %552 = vmatpush.bf16.msra.mxu0 %v492
  %553 = vmatpush.bf16.msra.mxu0 %v488
  %554 = vmatpush.bf16.msra.mxu0 %v484
  %555 = vmatpush.bf16.msra.mxu0 %v480
  %556 = vmatpush.bf16.msra.mxu0 %v476
  %557 = vmatpush.bf16.msra.mxu0 %v472
  %558 = vmatpush.bf16.msra.mxu0 %v468
  %559 = vmatpush.bf16.msra.mxu0 %v464
  %560 = vmatmul.bf16.gmra.mxu0 %v333
  %v561 = vpop.f32.mrf.mxu0
  %v562 = vadd.f32 0.0, %v561
  %v563 = vpop.f32.mrf.mxu0
  %564 = vdwg.mxu0
  %565 = vmatpush.bf16.msra.mxu0 %v493
  %566 = vmatpush.bf16.msra.mxu0 %v489
  %567 = vmatpush.bf16.msra.mxu0 %v485
  %568 = vmatpush.bf16.msra.mxu0 %v481
  %569 = vmatpush.bf16.msra.mxu0 %v477
  %570 = vmatpush.bf16.msra.mxu0 %v473
  %571 = vmatpush.bf16.msra.mxu0 %v469
  %572 = vmatpush.bf16.msra.mxu0 %v465
  %573 = vmatmul.bf16.gmra.mxu0 %v333
  %v574 = vpop.f32.mrf.mxu0
  %v575 = vadd.f32 0.0, %v574
  %v576 = vpop.f32.mrf.mxu0
  %577 = vdwg.mxu0
  %v578 = vadd.f32 %v329, %v536
  %v579 = vadd.f32 %v330, %v549
  %v580 = vadd.f32 %v331, %v562
  %v581 = vadd.f32 %v332, %v575
  %v582 = vxor.u32 %v578, 2147483648
  %v583 = vxor.u32 %v579, 2147483648
  %v584 = vxor.u32 %v580, 2147483648
  %v585 = vmul.f32 %v582, 1.442695
  %v586 = vpow.pop %v585
  %v587 = vmul.f32 %v583, 1.442695
  %v588 = vpow.pop %v587
  %v589 = vmul.f32 %v584, 1.442695
  %v590 = vpow.pop %v589
  %v591 = vadd.f32 %v586, 1.0
  %v592 = vadd.f32 %v588, 1.0
  %v593 = vadd.f32 %v590, 1.0
  %v594 = vrcp.pop %v591
  %v595 = vmul.f32 %v591, %v594
  %v596 = vsub.f32 1.0, %v595
  %v597 = vmul.f32 %v594, %v596
  %v598 = vadd.f32 %v594, %v597
  %vm599 = vweird.f32 %v591
  %vm600 = vweird.f32 %v594
  %vm601 = vmor %vm599, %vm600
  %v602 = vsel %vm601, %v594, %v598
  %v603 = vand.u32 2147483647, %v591
  %vm604 = vcmp.eq.f32.partialorder %v603, 8.507059e+37
  %v605 = vand.u32 %v591, 2147483648
  %v606 = vor.u32 1.1754944e-38, %v605
  %v607 = vsel %vm604, %v606, %v602
  %v608 = vmul.f32 1.0, %v607
  %v609 = vrcp.pop %v592
  %v610 = vmul.f32 %v592, %v609
  %v611 = vsub.f32 1.0, %v610
  %v612 = vmul.f32 %v609, %v611
  %v613 = vadd.f32 %v609, %v612
  %vm614 = vweird.f32 %v592
  %vm615 = vweird.f32 %v609
  %vm616 = vmor %vm614, %vm615
  %v617 = vsel %vm616, %v609, %v613
  %v618 = vand.u32 2147483647, %v592
  %vm619 = vcmp.eq.f32.partialorder %v618, 8.507059e+37
  %v620 = vand.u32 %v592, 2147483648
  %v621 = vor.u32 1.1754944e-38, %v620
  %v622 = vsel %vm619, %v621, %v617
  %v623 = vmul.f32 1.0, %v622
  %v624 = vrcp.pop %v593
  %v625 = vmul.f32 %v593, %v624
  %v626 = vsub.f32 1.0, %v625
  %v627 = vmul.f32 %v624, %v626
  %v628 = vadd.f32 %v624, %v627
  %vm629 = vweird.f32 %v593
  %vm630 = vweird.f32 %v624
  %vm631 = vmor %vm629, %vm630
  %v632 = vsel %vm631, %v624, %v628
  %v633 = vand.u32 2147483647, %v593
  %vm634 = vcmp.eq.f32.partialorder %v633, 8.507059e+37
  %v635 = vand.u32 %v593, 2147483648
  %v636 = vor.u32 1.1754944e-38, %v635
  %v637 = vsel %vm634, %v636, %v632
  %v638 = vmul.f32 1.0, %v637
  %v639 = vtanh.pop %v581
  %v640 = vmul.f32 %v623, %v324
  %v641 = vmul.f32 %v608, %v639
  %v642 = vadd.f32 %v640, %v641
  %v643 = vtanh.pop %v642
  %v644 = vmul.f32 %v638, %v643
  %s645 = scalar_lea.vmem %s2, 8
  %646 = vst [vmem:[%s645] sm:$0xff] %v644
  %s647 = scalar_lea.vmem %s0, 64
  %v648 = vld [vmem:[%s647] sm:$0xff]
  %v649 = vld [vmem:[%s647 + $0x8] sm:$0xff]
  %v650 = vld [vmem:[%s647 + $0x10] sm:$0xff]
  %v651 = vld [vmem:[%s647 + $0x18] sm:$0xff]
  %v652 = vpack.c.bf16 %v644, %v644
  %v653 = vld [vmem:[%s1] sm:$0xff]
  %v654 = vld [vmem:[%s1 + $0x8] sm:$0xff]
  %v655 = vld [vmem:[%s1 + $0x10] sm:$0xff]
  %v656 = vld [vmem:[%s1 + $0x18] sm:$0xff]
  %v657 = vld [vmem:[%s1 + $0x20] sm:$0xff]
  %v658 = vld [vmem:[%s1 + $0x28] sm:$0xff]
  %v659 = vld [vmem:[%s1 + $0x30] sm:$0xff]
  %v660 = vld [vmem:[%s1 + $0x38] sm:$0xff]
  %v661 = vld [vmem:[%s1 + $0x40] sm:$0xff]
  %v662 = vld [vmem:[%s1 + $0x48] sm:$0xff]
  %v663 = vld [vmem:[%s1 + $0x50] sm:$0xff]
  %v664 = vld [vmem:[%s1 + $0x58] sm:$0xff]
  %v665 = vld [vmem:[%s1 + $0x60] sm:$0xff]
  %v666 = vld [vmem:[%s1 + $0x68] sm:$0xff]
  %v667 = vld [vmem:[%s1 + $0x70] sm:$0xff]
  %v668 = vld [vmem:[%s1 + $0x78] sm:$0xff]
  %v669 = vld [vmem:[%s1 + $0x80] sm:$0xff]
  %v670 = vld [vmem:[%s1 + $0x88] sm:$0xff]
  %v671 = vld [vmem:[%s1 + $0x90] sm:$0xff]
  %v672 = vld [vmem:[%s1 + $0x98] sm:$0xff]
  %v673 = vld [vmem:[%s1 + $0xa0] sm:$0xff]
  %v674 = vld [vmem:[%s1 + $0xa8] sm:$0xff]
  %v675 = vld [vmem:[%s1 + $0xb0] sm:$0xff]
  %v676 = vld [vmem:[%s1 + $0xb8] sm:$0xff]
  %v677 = vld [vmem:[%s1 + $0xc0] sm:$0xff]
  %v678 = vld [vmem:[%s1 + $0xc8] sm:$0xff]
  %v679 = vld [vmem:[%s1 + $0xd0] sm:$0xff]
  %v680 = vld [vmem:[%s1 + $0xd8] sm:$0xff]
  %v681 = vld [vmem:[%s1 + $0xe0] sm:$0xff]
  %v682 = vld [vmem:[%s1 + $0xe8] sm:$0xff]
  %v683 = vld [vmem:[%s1 + $0xf0] sm:$0xff]
  %v684 = vld [vmem:[%s1 + $0xf8] sm:$0xff]
  %v717 = vunpack.c.l.b16 %v653
  %v718 = vunpack.c.h.b16 %v653
  %v719 = vunpack.c.l.b16 %v654
  %v720 = vunpack.c.h.b16 %v654
  %v721 = vunpack.c.l.b16 %v655
  %v722 = vunpack.c.h.b16 %v655
  %v723 = vunpack.c.l.b16 %v656
  %v724 = vunpack.c.h.b16 %v656
  %v725 = vunpack.c.l.b16 %v657
  %v726 = vunpack.c.h.b16 %v657
  %v727 = vunpack.c.l.b16 %v658
  %v728 = vunpack.c.h.b16 %v658
  %v729 = vunpack.c.l.b16 %v659
  %v730 = vunpack.c.h.b16 %v659
  %v731 = vunpack.c.l.b16 %v660
  %v732 = vunpack.c.h.b16 %v660
  %v733 = vunpack.c.l.b16 %v661
  %v734 = vunpack.c.h.b16 %v661
  %v735 = vunpack.c.l.b16 %v662
  %v736 = vunpack.c.h.b16 %v662
  %v737 = vunpack.c.l.b16 %v663
  %v738 = vunpack.c.h.b16 %v663
  %v739 = vunpack.c.l.b16 %v664
  %v740 = vunpack.c.h.b16 %v664
  %v741 = vunpack.c.l.b16 %v665
  %v742 = vunpack.c.h.b16 %v665
  %v743 = vunpack.c.l.b16 %v666
  %v744 = vunpack.c.h.b16 %v666
  %v745 = vunpack.c.l.b16 %v667
  %v746 = vunpack.c.h.b16 %v667
  %v747 = vunpack.c.l.b16 %v668
  %v748 = vunpack.c.h.b16 %v668
  %v749 = vunpack.c.l.b16 %v669
  %v750 = vunpack.c.h.b16 %v669
  %v751 = vunpack.c.l.b16 %v670
  %v752 = vunpack.c.h.b16 %v670
  %v753 = vunpack.c.l.b16 %v671
  %v754 = vunpack.c.h.b16 %v671
  %v755 = vunpack.c.l.b16 %v672
  %v756 = vunpack.c.h.b16 %v672
  %v757 = vunpack.c.l.b16 %v673
  %v758 = vunpack.c.h.b16 %v673
  %v759 = vunpack.c.l.b16 %v674
  %v760 = vunpack.c.h.b16 %v674
  %v761 = vunpack.c.l.b16 %v675
  %v762 = vunpack.c.h.b16 %v675
  %v763 = vunpack.c.l.b16 %v676
  %v764 = vunpack.c.h.b16 %v676
  %v765 = vunpack.c.l.b16 %v677
  %v766 = vunpack.c.h.b16 %v677
  %v767 = vunpack.c.l.b16 %v678
  %v768 = vunpack.c.h.b16 %v678
  %v769 = vunpack.c.l.b16 %v679
  %v770 = vunpack.c.h.b16 %v679
  %v771 = vunpack.c.l.b16 %v680
  %v772 = vunpack.c.h.b16 %v680
  %v773 = vunpack.c.l.b16 %v681
  %v774 = vunpack.c.h.b16 %v681
  %v775 = vunpack.c.l.b16 %v682
  %v776 = vunpack.c.h.b16 %v682
  %v777 = vunpack.c.l.b16 %v683
  %v778 = vunpack.c.h.b16 %v683
  %v779 = vunpack.c.l.b16 %v684
  %v780 = vunpack.c.h.b16 %v684
  %v781 = vpack.c.b16 %v721, %v717
  %v782 = vpack.c.b16 %v722, %v718
  %v783 = vpack.c.b16 %v723, %v719
  %v784 = vpack.c.b16 %v724, %v720
  %v785 = vpack.c.b16 %v729, %v725
  %v786 = vpack.c.b16 %v730, %v726
  %v787 = vpack.c.b16 %v731, %v727
  %v788 = vpack.c.b16 %v732, %v728
  %v789 = vpack.c.b16 %v737, %v733
  %v790 = vpack.c.b16 %v738, %v734
  %v791 = vpack.c.b16 %v739, %v735
  %v792 = vpack.c.b16 %v740, %v736
  %v793 = vpack.c.b16 %v745, %v741
  %v794 = vpack.c.b16 %v746, %v742
  %v795 = vpack.c.b16 %v747, %v743
  %v796 = vpack.c.b16 %v748, %v744
  %v797 = vpack.c.b16 %v753, %v749
  %v798 = vpack.c.b16 %v754, %v750
  %v799 = vpack.c.b16 %v755, %v751
  %v800 = vpack.c.b16 %v756, %v752
  %v801 = vpack.c.b16 %v761, %v757
  %v802 = vpack.c.b16 %v762, %v758
  %v803 = vpack.c.b16 %v763, %v759
  %v804 = vpack.c.b16 %v764, %v760
  %v805 = vpack.c.b16 %v769, %v765
  %v806 = vpack.c.b16 %v770, %v766
  %v807 = vpack.c.b16 %v771, %v767
  %v808 = vpack.c.b16 %v772, %v768
  %v809 = vpack.c.b16 %v777, %v773
  %v810 = vpack.c.b16 %v778, %v774
  %v811 = vpack.c.b16 %v779, %v775
  %v812 = vpack.c.b16 %v780, %v776
  %845 = vmatpush.bf16.msra.mxu0 %v809
  %846 = vmatpush.bf16.msra.mxu0 %v805
  %847 = vmatpush.bf16.msra.mxu0 %v801
  %848 = vmatpush.bf16.msra.mxu0 %v797
  %849 = vmatpush.bf16.msra.mxu0 %v793
  %850 = vmatpush.bf16.msra.mxu0 %v789
  %851 = vmatpush.bf16.msra.mxu0 %v785
  %852 = vmatpush.bf16.msra.mxu0 %v781
  %853 = vmatmul.bf16.gmra.mxu0 %v652
  %v854 = vpop.f32.mrf.mxu0
  %v855 = vadd.f32 0.0, %v854
  %v856 = vpop.f32.mrf.mxu0
  %857 = vdwg.mxu0
  %858 = vmatpush.bf16.msra.mxu0 %v810
  %859 = vmatpush.bf16.msra.mxu0 %v806
  %860 = vmatpush.bf16.msra.mxu0 %v802
  %861 = vmatpush.bf16.msra.mxu0 %v798
  %862 = vmatpush.bf16.msra.mxu0 %v794
  %863 = vmatpush.bf16.msra.mxu0 %v790
  %864 = vmatpush.bf16.msra.mxu0 %v786
  %865 = vmatpush.bf16.msra.mxu0 %v782
  %866 = vmatmul.bf16.gmra.mxu0 %v652
  %v867 = vpop.f32.mrf.mxu0
  %v868 = vadd.f32 0.0, %v867
  %v869 = vpop.f32.mrf.mxu0
  %870 = vdwg.mxu0
  %871 = vmatpush.bf16.msra.mxu0 %v811
  %872 = vmatpush.bf16.msra.mxu0 %v807
  %873 = vmatpush.bf16.msra.mxu0 %v803
  %874 = vmatpush.bf16.msra.mxu0 %v799
  %875 = vmatpush.bf16.msra.mxu0 %v795
  %876 = vmatpush.bf16.msra.mxu0 %v791
  %877 = vmatpush.bf16.msra.mxu0 %v787
  %878 = vmatpush.bf16.msra.mxu0 %v783
  %879 = vmatmul.bf16.gmra.mxu0 %v652
  %v880 = vpop.f32.mrf.mxu0
  %v881 = vadd.f32 0.0, %v880
  %v882 = vpop.f32.mrf.mxu0
  %883 = vdwg.mxu0
  %884 = vmatpush.bf16.msra.mxu0 %v812
  %885 = vmatpush.bf16.msra.mxu0 %v808
  %886 = vmatpush.bf16.msra.mxu0 %v804
  %887 = vmatpush.bf16.msra.mxu0 %v800
  %888 = vmatpush.bf16.msra.mxu0 %v796
  %889 = vmatpush.bf16.msra.mxu0 %v792
  %890 = vmatpush.bf16.msra.mxu0 %v788
  %891 = vmatpush.bf16.msra.mxu0 %v784
  %892 = vmatmul.bf16.gmra.mxu0 %v652
  %v893 = vpop.f32.mrf.mxu0
  %v894 = vadd.f32 0.0, %v893
  %v895 = vpop.f32.mrf.mxu0
  %896 = vdwg.mxu0
  %v897 = vadd.f32 %v648, %v855
  %v898 = vadd.f32 %v649, %v868
  %v899 = vadd.f32 %v650, %v881
  %v900 = vadd.f32 %v651, %v894
  %v901 = vxor.u32 %v897, 2147483648
  %v902 = vxor.u32 %v898, 2147483648
  %v903 = vxor.u32 %v899, 2147483648
  %v904 = vmul.f32 %v901, 1.442695
  %v905 = vpow.pop %v904
  %v906 = vmul.f32 %v902, 1.442695
  %v907 = vpow.pop %v906
  %v908 = vmul.f32 %v903, 1.442695
  %v909 = vpow.pop %v908
  %v910 = vadd.f32 %v905, 1.0
  %v911 = vadd.f32 %v907, 1.0
  %v912 = vadd.f32 %v909, 1.0
  %v913 = vrcp.pop %v910
  %v914 = vmul.f32 %v910, %v913
  %v915 = vsub.f32 1.0, %v914
  %v916 = vmul.f32 %v913, %v915
  %v917 = vadd.f32 %v913, %v916
  %vm918 = vweird.f32 %v910
  %vm919 = vweird.f32 %v913
  %vm920 = vmor %vm918, %vm919
  %v921 = vsel %vm920, %v913, %v917
  %v922 = vand.u32 2147483647, %v910
  %vm923 = vcmp.eq.f32.partialorder %v922, 8.507059e+37
  %v924 = vand.u32 %v910, 2147483648
  %v925 = vor.u32 1.1754944e-38, %v924
  %v926 = vsel %vm923, %v925, %v921
  %v927 = vmul.f32 1.0, %v926
  %v928 = vrcp.pop %v911
  %v929 = vmul.f32 %v911, %v928
  %v930 = vsub.f32 1.0, %v929
  %v931 = vmul.f32 %v928, %v930
  %v932 = vadd.f32 %v928, %v931
  %vm933 = vweird.f32 %v911
  %vm934 = vweird.f32 %v928
  %vm935 = vmor %vm933, %vm934
  %v936 = vsel %vm935, %v928, %v932
  %v937 = vand.u32 2147483647, %v911
  %vm938 = vcmp.eq.f32.partialorder %v937, 8.507059e+37
  %v939 = vand.u32 %v911, 2147483648
  %v940 = vor.u32 1.1754944e-38, %v939
  %v941 = vsel %vm938, %v940, %v936
  %v942 = vmul.f32 1.0, %v941
  %v943 = vrcp.pop %v912
  %v944 = vmul.f32 %v912, %v943
  %v945 = vsub.f32 1.0, %v944
  %v946 = vmul.f32 %v943, %v945
  %v947 = vadd.f32 %v943, %v946
  %vm948 = vweird.f32 %v912
  %vm949 = vweird.f32 %v943
  %vm950 = vmor %vm948, %vm949
  %v951 = vsel %vm950, %v943, %v947
  %v952 = vand.u32 2147483647, %v912
  %vm953 = vcmp.eq.f32.partialorder %v952, 8.507059e+37
  %v954 = vand.u32 %v912, 2147483648
  %v955 = vor.u32 1.1754944e-38, %v954
  %v956 = vsel %vm953, %v955, %v951
  %v957 = vmul.f32 1.0, %v956
  %v958 = vtanh.pop %v900
  %v959 = vmul.f32 %v942, %v642
  %v960 = vmul.f32 %v927, %v958
  %v961 = vadd.f32 %v959, %v960
  %v962 = vtanh.pop %v961
  %v963 = vmul.f32 %v957, %v962
  %s964 = scalar_lea.vmem %s2, 16
  %965 = vst [vmem:[%s964] sm:$0xff] %v963
  %s966 = scalar_lea.vmem %s0, 96
  %v967 = vld [vmem:[%s966] sm:$0xff]
  %v968 = vld [vmem:[%s966 + $0x8] sm:$0xff]
  %v969 = vld [vmem:[%s966 + $0x10] sm:$0xff]
  %v970 = vld [vmem:[%s966 + $0x18] sm:$0xff]
  %v971 = vpack.c.bf16 %v963, %v963
  %v972 = vld [vmem:[%s1] sm:$0xff]
  %v973 = vld [vmem:[%s1 + $0x8] sm:$0xff]
  %v974 = vld [vmem:[%s1 + $0x10] sm:$0xff]
  %v975 = vld [vmem:[%s1 + $0x18] sm:$0xff]
  %v976 = vld [vmem:[%s1 + $0x20] sm:$0xff]
  %v977 = vld [vmem:[%s1 + $0x28] sm:$0xff]
  %v978 = vld [vmem:[%s1 + $0x30] sm:$0xff]
  %v979 = vld [vmem:[%s1 + $0x38] sm:$0xff]
  %v980 = vld [vmem:[%s1 + $0x40] sm:$0xff]
  %v981 = vld [vmem:[%s1 + $0x48] sm:$0xff]
  %v982 = vld [vmem:[%s1 + $0x50] sm:$0xff]
  %v983 = vld [vmem:[%s1 + $0x58] sm:$0xff]
  %v984 = vld [vmem:[%s1 + $0x60] sm:$0xff]
  %v985 = vld [vmem:[%s1 + $0x68] sm:$0xff]
  %v986 = vld [vmem:[%s1 + $0x70] sm:$0xff]
  %v987 = vld [vmem:[%s1 + $0x78] sm:$0xff]
  %v988 = vld [vmem:[%s1 + $0x80] sm:$0xff]
  %v989 = vld [vmem:[%s1 + $0x88] sm:$0xff]
  %v990 = vld [vmem:[%s1 + $0x90] sm:$0xff]
  %v991 = vld [vmem:[%s1 + $0x98] sm:$0xff]
  %v992 = vld [vmem:[%s1 + $0xa0] sm:$0xff]
  %v993 = vld [vmem:[%s1 + $0xa8] sm:$0xff]
  %v994 = vld [vmem:[%s1 + $0xb0] sm:$0xff]
  %v995 = vld [vmem:[%s1 + $0xb8] sm:$0xff]
  %v996 = vld [vmem:[%s1 + $0xc0] sm:$0xff]
  %v997 = vld [vmem:[%s1 + $0xc8] sm:$0xff]
  %v998 = vld [vmem:[%s1 + $0xd0] sm:$0xff]
  %v999 = vld [vmem:[%s1 + $0xd8] sm:$0xff]
  %v1000 = vld [vmem:[%s1 + $0xe0] sm:$0xff]
  %v1001 = vld [vmem:[%s1 + $0xe8] sm:$0xff]
  %v1002 = vld [vmem:[%s1 + $0xf0] sm:$0xff]
  %v1003 = vld [vmem:[%s1 + $0xf8] sm:$0xff]
  %v1036 = vunpack.c.l.b16 %v972
  %v1037 = vunpack.c.h.b16 %v972
  %v1038 = vunpack.c.l.b16 %v973
  %v1039 = vunpack.c.h.b16 %v973
  %v1040 = vunpack.c.l.b16 %v974
  %v1041 = vunpack.c.h.b16 %v974
  %v1042 = vunpack.c.l.b16 %v975
  %v1043 = vunpack.c.h.b16 %v975
  %v1044 = vunpack.c.l.b16 %v976
  %v1045 = vunpack.c.h.b16 %v976
  %v1046 = vunpack.c.l.b16 %v977
  %v1047 = vunpack.c.h.b16 %v977
  %v1048 = vunpack.c.l.b16 %v978
  %v1049 = vunpack.c.h.b16 %v978
  %v1050 = vunpack.c.l.b16 %v979
  %v1051 = vunpack.c.h.b16 %v979
  %v1052 = vunpack.c.l.b16 %v980
  %v1053 = vunpack.c.h.b16 %v980
  %v1054 = vunpack.c.l.b16 %v981
  %v1055 = vunpack.c.h.b16 %v981
  %v1056 = vunpack.c.l.b16 %v982
  %v1057 = vunpack.c.h.b16 %v982
  %v1058 = vunpack.c.l.b16 %v983
  %v1059 = vunpack.c.h.b16 %v983
  %v1060 = vunpack.c.l.b16 %v984
  %v1061 = vunpack.c.h.b16 %v984
  %v1062 = vunpack.c.l.b16 %v985
  %v1063 = vunpack.c.h.b16 %v985
  %v1064 = vunpack.c.l.b16 %v986
  %v1065 = vunpack.c.h.b16 %v986
  %v1066 = vunpack.c.l.b16 %v987
  %v1067 = vunpack.c.h.b16 %v987
  %v1068 = vunpack.c.l.b16 %v988
  %v1069 = vunpack.c.h.b16 %v988
  %v1070 = vunpack.c.l.b16 %v989
  %v1071 = vunpack.c.h.b16 %v989
  %v1072 = vunpack.c.l.b16 %v990
  %v1073 = vunpack.c.h.b16 %v990
  %v1074 = vunpack.c.l.b16 %v991
  %v1075 = vunpack.c.h.b16 %v991
  %v1076 = vunpack.c.l.b16 %v992
  %v1077 = vunpack.c.h.b16 %v992
  %v1078 = vunpack.c.l.b16 %v993
  %v1079 = vunpack.c.h.b16 %v993
  %v1080 = vunpack.c.l.b16 %v994
  %v1081 = vunpack.c.h.b16 %v994
  %v1082 = vunpack.c.l.b16 %v995
  %v1083 = vunpack.c.h.b16 %v995
  %v1084 = vunpack.c.l.b16 %v996
  %v1085 = vunpack.c.h.b16 %v996
  %v1086 = vunpack.c.l.b16 %v997
  %v1087 = vunpack.c.h.b16 %v997
  %v1088 = vunpack.c.l.b16 %v998
  %v1089 = vunpack.c.h.b16 %v998
  %v1090 = vunpack.c.l.b16 %v999
  %v1091 = vunpack.c.h.b16 %v999
  %v1092 = vunpack.c.l.b16 %v1000
  %v1093 = vunpack.c.h.b16 %v1000
  %v1094 = vunpack.c.l.b16 %v1001
  %v1095 = vunpack.c.h.b16 %v1001
  %v1096 = vunpack.c.l.b16 %v1002
  %v1097 = vunpack.c.h.b16 %v1002
  %v1098 = vunpack.c.l.b16 %v1003
  %v1099 = vunpack.c.h.b16 %v1003
  %v1100 = vpack.c.b16 %v1040, %v1036
  %v1101 = vpack.c.b16 %v1041, %v1037
  %v1102 = vpack.c.b16 %v1042, %v1038
  %v1103 = vpack.c.b16 %v1043, %v1039
  %v1104 = vpack.c.b16 %v1048, %v1044
  %v1105 = vpack.c.b16 %v1049, %v1045
  %v1106 = vpack.c.b16 %v1050, %v1046
  %v1107 = vpack.c.b16 %v1051, %v1047
  %v1108 = vpack.c.b16 %v1056, %v1052
  %v1109 = vpack.c.b16 %v1057, %v1053
  %v1110 = vpack.c.b16 %v1058, %v1054
  %v1111 = vpack.c.b16 %v1059, %v1055
  %v1112 = vpack.c.b16 %v1064, %v1060
  %v1113 = vpack.c.b16 %v1065, %v1061
  %v1114 = vpack.c.b16 %v1066, %v1062
  %v1115 = vpack.c.b16 %v1067, %v1063
  %v1116 = vpack.c.b16 %v1072, %v1068
  %v1117 = vpack.c.b16 %v1073, %v1069
  %v1118 = vpack.c.b16 %v1074, %v1070
  %v1119 = vpack.c.b16 %v1075, %v1071
  %v1120 = vpack.c.b16 %v1080, %v1076
  %v1121 = vpack.c.b16 %v1081, %v1077
  %v1122 = vpack.c.b16 %v1082, %v1078
  %v1123 = vpack.c.b16 %v1083, %v1079
  %v1124 = vpack.c.b16 %v1088, %v1084
  %v1125 = vpack.c.b16 %v1089, %v1085
  %v1126 = vpack.c.b16 %v1090, %v1086
  %v1127 = vpack.c.b16 %v1091, %v1087
  %v1128 = vpack.c.b16 %v1096, %v1092
  %v1129 = vpack.c.b16 %v1097, %v1093
  %v1130 = vpack.c.b16 %v1098, %v1094
  %v1131 = vpack.c.b16 %v1099, %v1095
  %1164 = vmatpush.bf16.msra.mxu0 %v1128
  %1165 = vmatpush.bf16.msra.mxu0 %v1124
  %1166 = vmatpush.bf16.msra.mxu0 %v1120
  %1167 = vmatpush.bf16.msra.mxu0 %v1116
  %1168 = vmatpush.bf16.msra.mxu0 %v1112
  %1169 = vmatpush.bf16.msra.mxu0 %v1108
  %1170 = vmatpush.bf16.msra.mxu0 %v1104
  %1171 = vmatpush.bf16.msra.mxu0 %v1100
  %1172 = vmatmul.bf16.gmra.mxu0 %v971
  %v1173 = vpop.f32.mrf.mxu0
  %v1174 = vadd.f32 0.0, %v1173
  %v1175 = vpop.f32.mrf.mxu0
  %1176 = vdwg.mxu0
  %1177 = vmatpush.bf16.msra.mxu0 %v1129
  %1178 = vmatpush.bf16.msra.mxu0 %v1125
  %1179 = vmatpush.bf16.msra.mxu0 %v1121
  %1180 = vmatpush.bf16.msra.mxu0 %v1117
  %1181 = vmatpush.bf16.msra.mxu0 %v1113
  %1182 = vmatpush.bf16.msra.mxu0 %v1109
  %1183 = vmatpush.bf16.msra.mxu0 %v1105
  %1184 = vmatpush.bf16.msra.mxu0 %v1101
  %1185 = vmatmul.bf16.gmra.mxu0 %v971
  %v1186 = vpop.f32.mrf.mxu0
  %v1187 = vadd.f32 0.0, %v1186
  %v1188 = vpop.f32.mrf.mxu0
  %1189 = vdwg.mxu0
  %1190 = vmatpush.bf16.msra.mxu0 %v1130
  %1191 = vmatpush.bf16.msra.mxu0 %v1126
  %1192 = vmatpush.bf16.msra.mxu0 %v1122
  %1193 = vmatpush.bf16.msra.mxu0 %v1118
  %1194 = vmatpush.bf16.msra.mxu0 %v1114
  %1195 = vmatpush.bf16.msra.mxu0 %v1110
  %1196 = vmatpush.bf16.msra.mxu0 %v1106
  %1197 = vmatpush.bf16.msra.mxu0 %v1102
  %1198 = vmatmul.bf16.gmra.mxu0 %v971
  %v1199 = vpop.f32.mrf.mxu0
  %v1200 = vadd.f32 0.0, %v1199
  %v1201 = vpop.f32.mrf.mxu0
  %1202 = vdwg.mxu0
  %1203 = vmatpush.bf16.msra.mxu0 %v1131
  %1204 = vmatpush.bf16.msra.mxu0 %v1127
  %1205 = vmatpush.bf16.msra.mxu0 %v1123
  %1206 = vmatpush.bf16.msra.mxu0 %v1119
  %1207 = vmatpush.bf16.msra.mxu0 %v1115
  %1208 = vmatpush.bf16.msra.mxu0 %v1111
  %1209 = vmatpush.bf16.msra.mxu0 %v1107
  %1210 = vmatpush.bf16.msra.mxu0 %v1103
  %1211 = vmatmul.bf16.gmra.mxu0 %v971
  %v1212 = vpop.f32.mrf.mxu0
  %v1213 = vadd.f32 0.0, %v1212
  %v1214 = vpop.f32.mrf.mxu0
  %1215 = vdwg.mxu0
  %v1216 = vadd.f32 %v967, %v1174
  %v1217 = vadd.f32 %v968, %v1187
  %v1218 = vadd.f32 %v969, %v1200
  %v1219 = vadd.f32 %v970, %v1213
  %v1220 = vxor.u32 %v1216, 2147483648
  %v1221 = vxor.u32 %v1217, 2147483648
  %v1222 = vxor.u32 %v1218, 2147483648
  %v1223 = vmul.f32 %v1220, 1.442695
  %v1224 = vpow.pop %v1223
  %v1225 = vmul.f32 %v1221, 1.442695
  %v1226 = vpow.pop %v1225
  %v1227 = vmul.f32 %v1222, 1.442695
  %v1228 = vpow.pop %v1227
  %v1229 = vadd.f32 %v1224, 1.0
  %v1230 = vadd.f32 %v1226, 1.0
  %v1231 = vadd.f32 %v1228, 1.0
  %v1232 = vrcp.pop %v1229
  %v1233 = vmul.f32 %v1229, %v1232
  %v1234 = vsub.f32 1.0, %v1233
  %v1235 = vmul.f32 %v1232, %v1234
  %v1236 = vadd.f32 %v1232, %v1235
  %vm1237 = vweird.f32 %v1229
  %vm1238 = vweird.f32 %v1232
  %vm1239 = vmor %vm1237, %vm1238
  %v1240 = vsel %vm1239, %v1232, %v1236
  %v1241 = vand.u32 2147483647, %v1229
  %vm1242 = vcmp.eq.f32.partialorder %v1241, 8.507059e+37
  %v1243 = vand.u32 %v1229, 2147483648
  %v1244 = vor.u32 1.1754944e-38, %v1243
  %v1245 = vsel %vm1242, %v1244, %v1240
  %v1246 = vmul.f32 1.0, %v1245
  %v1247 = vrcp.pop %v1230
  %v1248 = vmul.f32 %v1230, %v1247
  %v1249 = vsub.f32 1.0, %v1248
  %v1250 = vmul.f32 %v1247, %v1249
  %v1251 = vadd.f32 %v1247, %v1250
  %vm1252 = vweird.f32 %v1230
  %vm1253 = vweird.f32 %v1247
  %vm1254 = vmor %vm1252, %vm1253
  %v1255 = vsel %vm1254, %v1247, %v1251
  %v1256 = vand.u32 2147483647, %v1230
  %vm1257 = vcmp.eq.f32.partialorder %v1256, 8.507059e+37
  %v1258 = vand.u32 %v1230, 2147483648
  %v1259 = vor.u32 1.1754944e-38, %v1258
  %v1260 = vsel %vm1257, %v1259, %v1255
  %v1261 = vmul.f32 1.0, %v1260
  %v1262 = vrcp.pop %v1231
  %v1263 = vmul.f32 %v1231, %v1262
  %v1264 = vsub.f32 1.0, %v1263
  %v1265 = vmul.f32 %v1262, %v1264
  %v1266 = vadd.f32 %v1262, %v1265
  %vm1267 = vweird.f32 %v1231
  %vm1268 = vweird.f32 %v1262
  %vm1269 = vmor %vm1267, %vm1268
  %v1270 = vsel %vm1269, %v1262, %v1266
  %v1271 = vand.u32 2147483647, %v1231
  %vm1272 = vcmp.eq.f32.partialorder %v1271, 8.507059e+37
  %v1273 = vand.u32 %v1231, 2147483648
  %v1274 = vor.u32 1.1754944e-38, %v1273
  %v1275 = vsel %vm1272, %v1274, %v1270
  %v1276 = vmul.f32 1.0, %v1275
  %v1277 = vtanh.pop %v1219
  %v1278 = vmul.f32 %v1261, %v961
  %v1279 = vmul.f32 %v1246, %v1277
  %v1280 = vadd.f32 %v1278, %v1279
  %v1281 = vtanh.pop %v1280
  %v1282 = vmul.f32 %v1276, %v1281
  %s1283 = scalar_lea.vmem %s2, 24
  %1284 = vst [vmem:[%s1283] sm:$0xff] %v1282
  %s1285 = scalar_lea.vmem %s0, 128
  %v1286 = vld [vmem:[%s1285] sm:$0xff]
  %v1287 = vld [vmem:[%s1285 + $0x8] sm:$0xff]
  %v1288 = vld [vmem:[%s1285 + $0x10] sm:$0xff]
  %v1289 = vld [vmem:[%s1285 + $0x18] sm:$0xff]
  %v1290 = vpack.c.bf16 %v1282, %v1282
  %v1291 = vld [vmem:[%s1] sm:$0xff]
  %v1292 = vld [vmem:[%s1 + $0x8] sm:$0xff]
  %v1293 = vld [vmem:[%s1 + $0x10] sm:$0xff]
  %v1294 = vld [vmem:[%s1 + $0x18] sm:$0xff]
  %v1295 = vld [vmem:[%s1 + $0x20] sm:$0xff]
  %v1296 = vld [vmem:[%s1 + $0x28] sm:$0xff]
  %v1297 = vld [vmem:[%s1 + $0x30] sm:$0xff]
  %v1298 = vld [vmem:[%s1 + $0x38] sm:$0xff]
  %v1299 = vld [vmem:[%s1 + $0x40] sm:$0xff]
  %v1300 = vld [vmem:[%s1 + $0x48] sm:$0xff]
  %v1301 = vld [vmem:[%s1 + $0x50] sm:$0xff]
  %v1302 = vld [vmem:[%s1 + $0x58] sm:$0xff]
  %v1303 = vld [vmem:[%s1 + $0x60] sm:$0xff]
  %v1304 = vld [vmem:[%s1 + $0x68] sm:$0xff]
  %v1305 = vld [vmem:[%s1 + $0x70] sm:$0xff]
  %v1306 = vld [vmem:[%s1 + $0x78] sm:$0xff]
  %v1307 = vld [vmem:[%s1 + $0x80] sm:$0xff]
  %v1308 = vld [vmem:[%s1 + $0x88] sm:$0xff]
  %v1309 = vld [vmem:[%s1 + $0x90] sm:$0xff]
  %v1310 = vld [vmem:[%s1 + $0x98] sm:$0xff]
  %v1311 = vld [vmem:[%s1 + $0xa0] sm:$0xff]
  %v1312 = vld [vmem:[%s1 + $0xa8] sm:$0xff]
  %v1313 = vld [vmem:[%s1 + $0xb0] sm:$0xff]
  %v1314 = vld [vmem:[%s1 + $0xb8] sm:$0xff]
  %v1315 = vld [vmem:[%s1 + $0xc0] sm:$0xff]
  %v1316 = vld [vmem:[%s1 + $0xc8] sm:$0xff]
  %v1317 = vld [vmem:[%s1 + $0xd0] sm:$0xff]
  %v1318 = vld [vmem:[%s1 + $0xd8] sm:$0xff]
  %v1319 = vld [vmem:[%s1 + $0xe0] sm:$0xff]
  %v1320 = vld [vmem:[%s1 + $0xe8] sm:$0xff]
  %v1321 = vld [vmem:[%s1 + $0xf0] sm:$0xff]
  %v1322 = vld [vmem:[%s1 + $0xf8] sm:$0xff]
  %v1355 = vunpack.c.l.b16 %v1291
  %v1356 = vunpack.c.h.b16 %v1291
  %v1357 = vunpack.c.l.b16 %v1292
  %v1358 = vunpack.c.h.b16 %v1292
  %v1359 = vunpack.c.l.b16 %v1293
  %v1360 = vunpack.c.h.b16 %v1293
  %v1361 = vunpack.c.l.b16 %v1294
  %v1362 = vunpack.c.h.b16 %v1294
  %v1363 = vunpack.c.l.b16 %v1295
  %v1364 = vunpack.c.h.b16 %v1295
  %v1365 = vunpack.c.l.b16 %v1296
  %v1366 = vunpack.c.h.b16 %v1296
  %v1367 = vunpack.c.l.b16 %v1297
  %v1368 = vunpack.c.h.b16 %v1297
  %v1369 = vunpack.c.l.b16 %v1298
  %v1370 = vunpack.c.h.b16 %v1298
  %v1371 = vunpack.c.l.b16 %v1299
  %v1372 = vunpack.c.h.b16 %v1299
  %v1373 = vunpack.c.l.b16 %v1300
  %v1374 = vunpack.c.h.b16 %v1300
  %v1375 = vunpack.c.l.b16 %v1301
  %v1376 = vunpack.c.h.b16 %v1301
  %v1377 = vunpack.c.l.b16 %v1302
  %v1378 = vunpack.c.h.b16 %v1302
  %v1379 = vunpack.c.l.b16 %v1303
  %v1380 = vunpack.c.h.b16 %v1303
  %v1381 = vunpack.c.l.b16 %v1304
  %v1382 = vunpack.c.h.b16 %v1304
  %v1383 = vunpack.c.l.b16 %v1305
  %v1384 = vunpack.c.h.b16 %v1305
  %v1385 = vunpack.c.l.b16 %v1306
  %v1386 = vunpack.c.h.b16 %v1306
  %v1387 = vunpack.c.l.b16 %v1307
  %v1388 = vunpack.c.h.b16 %v1307
  %v1389 = vunpack.c.l.b16 %v1308
  %v1390 = vunpack.c.h.b16 %v1308
  %v1391 = vunpack.c.l.b16 %v1309
  %v1392 = vunpack.c.h.b16 %v1309
  %v1393 = vunpack.c.l.b16 %v1310
  %v1394 = vunpack.c.h.b16 %v1310
  %v1395 = vunpack.c.l.b16 %v1311
  %v1396 = vunpack.c.h.b16 %v1311
  %v1397 = vunpack.c.l.b16 %v1312
  %v1398 = vunpack.c.h.b16 %v1312
  %v1399 = vunpack.c.l.b16 %v1313
  %v1400 = vunpack.c.h.b16 %v1313
  %v1401 = vunpack.c.l.b16 %v1314
  %v1402 = vunpack.c.h.b16 %v1314
  %v1403 = vunpack.c.l.b16 %v1315
  %v1404 = vunpack.c.h.b16 %v1315
  %v1405 = vunpack.c.l.b16 %v1316
  %v1406 = vunpack.c.h.b16 %v1316
  %v1407 = vunpack.c.l.b16 %v1317
  %v1408 = vunpack.c.h.b16 %v1317
  %v1409 = vunpack.c.l.b16 %v1318
  %v1410 = vunpack.c.h.b16 %v1318
  %v1411 = vunpack.c.l.b16 %v1319
  %v1412 = vunpack.c.h.b16 %v1319
  %v1413 = vunpack.c.l.b16 %v1320
  %v1414 = vunpack.c.h.b16 %v1320
  %v1415 = vunpack.c.l.b16 %v1321
  %v1416 = vunpack.c.h.b16 %v1321
  %v1417 = vunpack.c.l.b16 %v1322
  %v1418 = vunpack.c.h.b16 %v1322
  %v1419 = vpack.c.b16 %v1359, %v1355
  %v1420 = vpack.c.b16 %v1360, %v1356
  %v1421 = vpack.c.b16 %v1361, %v1357
  %v1422 = vpack.c.b16 %v1362, %v1358
  %v1423 = vpack.c.b16 %v1367, %v1363
  %v1424 = vpack.c.b16 %v1368, %v1364
  %v1425 = vpack.c.b16 %v1369, %v1365
  %v1426 = vpack.c.b16 %v1370, %v1366
  %v1427 = vpack.c.b16 %v1375, %v1371
  %v1428 = vpack.c.b16 %v1376, %v1372
  %v1429 = vpack.c.b16 %v1377, %v1373
  %v1430 = vpack.c.b16 %v1378, %v1374
  %v1431 = vpack.c.b16 %v1383, %v1379
  %v1432 = vpack.c.b16 %v1384, %v1380
  %v1433 = vpack.c.b16 %v1385, %v1381
  %v1434 = vpack.c.b16 %v1386, %v1382
  %v1435 = vpack.c.b16 %v1391, %v1387
  %v1436 = vpack.c.b16 %v1392, %v1388
  %v1437 = vpack.c.b16 %v1393, %v1389
  %v1438 = vpack.c.b16 %v1394, %v1390
  %v1439 = vpack.c.b16 %v1399, %v1395
  %v1440 = vpack.c.b16 %v1400, %v1396
  %v1441 = vpack.c.b16 %v1401, %v1397
  %v1442 = vpack.c.b16 %v1402, %v1398
  %v1443 = vpack.c.b16 %v1407, %v1403
  %v1444 = vpack.c.b16 %v1408, %v1404
  %v1445 = vpack.c.b16 %v1409, %v1405
  %v1446 = vpack.c.b16 %v1410, %v1406
  %v1447 = vpack.c.b16 %v1415, %v1411
  %v1448 = vpack.c.b16 %v1416, %v1412
  %v1449 = vpack.c.b16 %v1417, %v1413
  %v1450 = vpack.c.b16 %v1418, %v1414
  %1483 = vmatpush.bf16.msra.mxu0 %v1447
  %1484 = vmatpush.bf16.msra.mxu0 %v1443
  %1485 = vmatpush.bf16.msra.mxu0 %v1439
  %1486 = vmatpush.bf16.msra.mxu0 %v1435
  %1487 = vmatpush.bf16.msra.mxu0 %v1431
  %1488 = vmatpush.bf16.msra.mxu0 %v1427
  %1489 = vmatpush.bf16.msra.mxu0 %v1423
  %1490 = vmatpush.bf16.msra.mxu0 %v1419
  %1491 = vmatmul.bf16.gmra.mxu0 %v1290
  %v1492 = vpop.f32.mrf.mxu0
  %v1493 = vadd.f32 0.0, %v1492
  %v1494 = vpop.f32.mrf.mxu0
  %1495 = vdwg.mxu0
  %1496 = vmatpush.bf16.msra.mxu0 %v1448
  %1497 = vmatpush.bf16.msra.mxu0 %v1444
  %1498 = vmatpush.bf16.msra.mxu0 %v1440
  %1499 = vmatpush.bf16.msra.mxu0 %v1436
  %1500 = vmatpush.bf16.msra.mxu0 %v1432
  %1501 = vmatpush.bf16.msra.mxu0 %v1428
  %1502 = vmatpush.bf16.msra.mxu0 %v1424
  %1503 = vmatpush.bf16.msra.mxu0 %v1420
  %1504 = vmatmul.bf16.gmra.mxu0 %v1290
  %v1505 = vpop.f32.mrf.mxu0
  %v1506 = vadd.f32 0.0, %v1505
  %v1507 = vpop.f32.mrf.mxu0
  %1508 = vdwg.mxu0
  %1509 = vmatpush.bf16.msra.mxu0 %v1449
  %1510 = vmatpush.bf16.msra.mxu0 %v1445
  %1511 = vmatpush.bf16.msra.mxu0 %v1441
  %1512 = vmatpush.bf16.msra.mxu0 %v1437
  %1513 = vmatpush.bf16.msra.mxu0 %v1433
  %1514 = vmatpush.bf16.msra.mxu0 %v1429
  %1515 = vmatpush.bf16.msra.mxu0 %v1425
  %1516 = vmatpush.bf16.msra.mxu0 %v1421
  %1517 = vmatmul.bf16.gmra.mxu0 %v1290
  %v1518 = vpop.f32.mrf.mxu0
  %v1519 = vadd.f32 0.0, %v1518
  %v1520 = vpop.f32.mrf.mxu0
  %1521 = vdwg.mxu0
  %1522 = vmatpush.bf16.msra.mxu0 %v1450
  %1523 = vmatpush.bf16.msra.mxu0 %v1446
  %1524 = vmatpush.bf16.msra.mxu0 %v1442
  %1525 = vmatpush.bf16.msra.mxu0 %v1438
  %1526 = vmatpush.bf16.msra.mxu0 %v1434
  %1527 = vmatpush.bf16.msra.mxu0 %v1430
  %1528 = vmatpush.bf16.msra.mxu0 %v1426
  %1529 = vmatpush.bf16.msra.mxu0 %v1422
  %1530 = vmatmul.bf16.gmra.mxu0 %v1290
  %v1531 = vpop.f32.mrf.mxu0
  %v1532 = vadd.f32 0.0, %v1531
  %v1533 = vpop.f32.mrf.mxu0
  %1534 = vdwg.mxu0
  %v1535 = vadd.f32 %v1286, %v1493
  %v1536 = vadd.f32 %v1287, %v1506
  %v1537 = vadd.f32 %v1288, %v1519
  %v1538 = vadd.f32 %v1289, %v1532
  %v1539 = vxor.u32 %v1535, 2147483648
  %v1540 = vxor.u32 %v1536, 2147483648
  %v1541 = vxor.u32 %v1537, 2147483648
  %v1542 = vmul.f32 %v1539, 1.442695
  %v1543 = vpow.pop %v1542
  %v1544 = vmul.f32 %v1540, 1.442695
  %v1545 = vpow.pop %v1544
  %v1546 = vmul.f32 %v1541, 1.442695
  %v1547 = vpow.pop %v1546
  %v1548 = vadd.f32 %v1543, 1.0
  %v1549 = vadd.f32 %v1545, 1.0
  %v1550 = vadd.f32 %v1547, 1.0
  %v1551 = vrcp.pop %v1548
  %v1552 = vmul.f32 %v1548, %v1551
  %v1553 = vsub.f32 1.0, %v1552
  %v1554 = vmul.f32 %v1551, %v1553
  %v1555 = vadd.f32 %v1551, %v1554
  %vm1556 = vweird.f32 %v1548
  %vm1557 = vweird.f32 %v1551
  %vm1558 = vmor %vm1556, %vm1557
  %v1559 = vsel %vm1558, %v1551, %v1555
  %v1560 = vand.u32 2147483647, %v1548
  %vm1561 = vcmp.eq.f32.partialorder %v1560, 8.507059e+37
  %v1562 = vand.u32 %v1548, 2147483648
  %v1563 = vor.u32 1.1754944e-38, %v1562
  %v1564 = vsel %vm1561, %v1563, %v1559
  %v1565 = vmul.f32 1.0, %v1564
  %v1566 = vrcp.pop %v1549
  %v1567 = vmul.f32 %v1549, %v1566
  %v1568 = vsub.f32 1.0, %v1567
  %v1569 = vmul.f32 %v1566, %v1568
  %v1570 = vadd.f32 %v1566, %v1569
  %vm1571 = vweird.f32 %v1549
  %vm1572 = vweird.f32 %v1566
  %vm1573 = vmor %vm1571, %vm1572
  %v1574 = vsel %vm1573, %v1566, %v1570
  %v1575 = vand.u32 2147483647, %v1549
  %vm1576 = vcmp.eq.f32.partialorder %v1575, 8.507059e+37
  %v1577 = vand.u32 %v1549, 2147483648
  %v1578 = vor.u32 1.1754944e-38, %v1577
  %v1579 = vsel %vm1576, %v1578, %v1574
  %v1580 = vmul.f32 1.0, %v1579
  %v1581 = vrcp.pop %v1550
  %v1582 = vmul.f32 %v1550, %v1581
  %v1583 = vsub.f32 1.0, %v1582
  %v1584 = vmul.f32 %v1581, %v1583
  %v1585 = vadd.f32 %v1581, %v1584
  %vm1586 = vweird.f32 %v1550
  %vm1587 = vweird.f32 %v1581
  %vm1588 = vmor %vm1586, %vm1587
  %v1589 = vsel %vm1588, %v1581, %v1585
  %v1590 = vand.u32 2147483647, %v1550
  %vm1591 = vcmp.eq.f32.partialorder %v1590, 8.507059e+37
  %v1592 = vand.u32 %v1550, 2147483648
  %v1593 = vor.u32 1.1754944e-38, %v1592
  %v1594 = vsel %vm1591, %v1593, %v1589
  %v1595 = vmul.f32 1.0, %v1594
  %v1596 = vtanh.pop %v1538
  %v1597 = vmul.f32 %v1580, %v1280
  %v1598 = vmul.f32 %v1565, %v1596
  %v1599 = vadd.f32 %v1597, %v1598
  %v1600 = vtanh.pop %v1599
  %v1601 = vmul.f32 %v1595, %v1600
  %s1602 = scalar_lea.vmem %s2, 32
  %1603 = vst [vmem:[%s1602] sm:$0xff] %v1601
  %s1604 = scalar_lea.vmem %s0, 160
  %v1605 = vld [vmem:[%s1604] sm:$0xff]
  %v1606 = vld [vmem:[%s1604 + $0x8] sm:$0xff]
  %v1607 = vld [vmem:[%s1604 + $0x10] sm:$0xff]
  %v1608 = vld [vmem:[%s1604 + $0x18] sm:$0xff]
  %v1609 = vpack.c.bf16 %v1601, %v1601
  %v1610 = vld [vmem:[%s1] sm:$0xff]
  %v1611 = vld [vmem:[%s1 + $0x8] sm:$0xff]
  %v1612 = vld [vmem:[%s1 + $0x10] sm:$0xff]
  %v1613 = vld [vmem:[%s1 + $0x18] sm:$0xff]
  %v1614 = vld [vmem:[%s1 + $0x20] sm:$0xff]
  %v1615 = vld [vmem:[%s1 + $0x28] sm:$0xff]
  %v1616 = vld [vmem:[%s1 + $0x30] sm:$0xff]
  %v1617 = vld [vmem:[%s1 + $0x38] sm:$0xff]
  %v1618 = vld [vmem:[%s1 + $0x40] sm:$0xff]
  %v1619 = vld [vmem:[%s1 + $0x48] sm:$0xff]
  %v1620 = vld [vmem:[%s1 + $0x50] sm:$0xff]
  %v1621 = vld [vmem:[%s1 + $0x58] sm:$0xff]
  %v1622 = vld [vmem:[%s1 + $0x60] sm:$0xff]
  %v1623 = vld [vmem:[%s1 + $0x68] sm:$0xff]
  %v1624 = vld [vmem:[%s1 + $0x70] sm:$0xff]
  %v1625 = vld [vmem:[%s1 + $0x78] sm:$0xff]
  %v1626 = vld [vmem:[%s1 + $0x80] sm:$0xff]
  %v1627 = vld [vmem:[%s1 + $0x88] sm:$0xff]
  %v1628 = vld [vmem:[%s1 + $0x90] sm:$0xff]
  %v1629 = vld [vmem:[%s1 + $0x98] sm:$0xff]
  %v1630 = vld [vmem:[%s1 + $0xa0] sm:$0xff]
  %v1631 = vld [vmem:[%s1 + $0xa8] sm:$0xff]
  %v1632 = vld [vmem:[%s1 + $0xb0] sm:$0xff]
  %v1633 = vld [vmem:[%s1 + $0xb8] sm:$0xff]
  %v1634 = vld [vmem:[%s1 + $0xc0] sm:$0xff]
  %v1635 = vld [vmem:[%s1 + $0xc8] sm:$0xff]
  %v1636 = vld [vmem:[%s1 + $0xd0] sm:$0xff]
  %v1637 = vld [vmem:[%s1 + $0xd8] sm:$0xff]
  %v1638 = vld [vmem:[%s1 + $0xe0] sm:$0xff]
  %v1639 = vld [vmem:[%s1 + $0xe8] sm:$0xff]
  %v1640 = vld [vmem:[%s1 + $0xf0] sm:$0xff]
  %v1641 = vld [vmem:[%s1 + $0xf8] sm:$0xff]
  %v1674 = vunpack.c.l.b16 %v1610
  %v1675 = vunpack.c.h.b16 %v1610
  %v1676 = vunpack.c.l.b16 %v1611
  %v1677 = vunpack.c.h.b16 %v1611
  %v1678 = vunpack.c.l.b16 %v1612
  %v1679 = vunpack.c.h.b16 %v1612
  %v1680 = vunpack.c.l.b16 %v1613
  %v1681 = vunpack.c.h.b16 %v1613
  %v1682 = vunpack.c.l.b16 %v1614
  %v1683 = vunpack.c.h.b16 %v1614
  %v1684 = vunpack.c.l.b16 %v1615
  %v1685 = vunpack.c.h.b16 %v1615
  %v1686 = vunpack.c.l.b16 %v1616
  %v1687 = vunpack.c.h.b16 %v1616
  %v1688 = vunpack.c.l.b16 %v1617
  %v1689 = vunpack.c.h.b16 %v1617
  %v1690 = vunpack.c.l.b16 %v1618
  %v1691 = vunpack.c.h.b16 %v1618
  %v1692 = vunpack.c.l.b16 %v1619
  %v1693 = vunpack.c.h.b16 %v1619
  %v1694 = vunpack.c.l.b16 %v1620
  %v1695 = vunpack.c.h.b16 %v1620
  %v1696 = vunpack.c.l.b16 %v1621
  %v1697 = vunpack.c.h.b16 %v1621
  %v1698 = vunpack.c.l.b16 %v1622
  %v1699 = vunpack.c.h.b16 %v1622
  %v1700 = vunpack.c.l.b16 %v1623
  %v1701 = vunpack.c.h.b16 %v1623
  %v1702 = vunpack.c.l.b16 %v1624
  %v1703 = vunpack.c.h.b16 %v1624
  %v1704 = vunpack.c.l.b16 %v1625
  %v1705 = vunpack.c.h.b16 %v1625
  %v1706 = vunpack.c.l.b16 %v1626
  %v1707 = vunpack.c.h.b16 %v1626
  %v1708 = vunpack.c.l.b16 %v1627
  %v1709 = vunpack.c.h.b16 %v1627
  %v1710 = vunpack.c.l.b16 %v1628
  %v1711 = vunpack.c.h.b16 %v1628
  %v1712 = vunpack.c.l.b16 %v1629
  %v1713 = vunpack.c.h.b16 %v1629
  %v1714 = vunpack.c.l.b16 %v1630
  %v1715 = vunpack.c.h.b16 %v1630
  %v1716 = vunpack.c.l.b16 %v1631
  %v1717 = vunpack.c.h.b16 %v1631
  %v1718 = vunpack.c.l.b16 %v1632
  %v1719 = vunpack.c.h.b16 %v1632
  %v1720 = vunpack.c.l.b16 %v1633
  %v1721 = vunpack.c.h.b16 %v1633
  %v1722 = vunpack.c.l.b16 %v1634
  %v1723 = vunpack.c.h.b16 %v1634
  %v1724 = vunpack.c.l.b16 %v1635
  %v1725 = vunpack.c.h.b16 %v1635
  %v1726 = vunpack.c.l.b16 %v1636
  %v1727 = vunpack.c.h.b16 %v1636
  %v1728 = vunpack.c.l.b16 %v1637
  %v1729 = vunpack.c.h.b16 %v1637
  %v1730 = vunpack.c.l.b16 %v1638
  %v1731 = vunpack.c.h.b16 %v1638
  %v1732 = vunpack.c.l.b16 %v1639
  %v1733 = vunpack.c.h.b16 %v1639
  %v1734 = vunpack.c.l.b16 %v1640
  %v1735 = vunpack.c.h.b16 %v1640
  %v1736 = vunpack.c.l.b16 %v1641
  %v1737 = vunpack.c.h.b16 %v1641
  %v1738 = vpack.c.b16 %v1678, %v1674
  %v1739 = vpack.c.b16 %v1679, %v1675
  %v1740 = vpack.c.b16 %v1680, %v1676
  %v1741 = vpack.c.b16 %v1681, %v1677
  %v1742 = vpack.c.b16 %v1686, %v1682
  %v1743 = vpack.c.b16 %v1687, %v1683
  %v1744 = vpack.c.b16 %v1688, %v1684
  %v1745 = vpack.c.b16 %v1689, %v1685
  %v1746 = vpack.c.b16 %v1694, %v1690
  %v1747 = vpack.c.b16 %v1695, %v1691
  %v1748 = vpack.c.b16 %v1696, %v1692
  %v1749 = vpack.c.b16 %v1697, %v1693
  %v1750 = vpack.c.b16 %v1702, %v1698
  %v1751 = vpack.c.b16 %v1703, %v1699
  %v1752 = vpack.c.b16 %v1704, %v1700
  %v1753 = vpack.c.b16 %v1705, %v1701
  %v1754 = vpack.c.b16 %v1710, %v1706
  %v1755 = vpack.c.b16 %v1711, %v1707
  %v1756 = vpack.c.b16 %v1712, %v1708
  %v1757 = vpack.c.b16 %v1713, %v1709
  %v1758 = vpack.c.b16 %v1718, %v1714
  %v1759 = vpack.c.b16 %v1719, %v1715
  %v1760 = vpack.c.b16 %v1720, %v1716
  %v1761 = vpack.c.b16 %v1721, %v1717
  %v1762 = vpack.c.b16 %v1726, %v1722
  %v1763 = vpack.c.b16 %v1727, %v1723
  %v1764 = vpack.c.b16 %v1728, %v1724
  %v1765 = vpack.c.b16 %v1729, %v1725
  %v1766 = vpack.c.b16 %v1734, %v1730
  %v1767 = vpack.c.b16 %v1735, %v1731
  %v1768 = vpack.c.b16 %v1736, %v1732
  %v1769 = vpack.c.b16 %v1737, %v1733
  %1802 = vmatpush.bf16.msra.mxu0 %v1766
  %1803 = vmatpush.bf16.msra.mxu0 %v1762
  %1804 = vmatpush.bf16.msra.mxu0 %v1758
  %1805 = vmatpush.bf16.msra.mxu0 %v1754
  %1806 = vmatpush.bf16.msra.mxu0 %v1750
  %1807 = vmatpush.bf16.msra.mxu0 %v1746
  %1808 = vmatpush.bf16.msra.mxu0 %v1742
  %1809 = vmatpush.bf16.msra.mxu0 %v1738
  %1810 = vmatmul.bf16.gmra.mxu0 %v1609
  %v1811 = vpop.f32.mrf.mxu0
  %v1812 = vadd.f32 0.0, %v1811
  %v1813 = vpop.f32.mrf.mxu0
  %1814 = vdwg.mxu0
  %1815 = vmatpush.bf16.msra.mxu0 %v1767
  %1816 = vmatpush.bf16.msra.mxu0 %v1763
  %1817 = vmatpush.bf16.msra.mxu0 %v1759
  %1818 = vmatpush.bf16.msra.mxu0 %v1755
  %1819 = vmatpush.bf16.msra.mxu0 %v1751
  %1820 = vmatpush.bf16.msra.mxu0 %v1747
  %1821 = vmatpush.bf16.msra.mxu0 %v1743
  %1822 = vmatpush.bf16.msra.mxu0 %v1739
  %1823 = vmatmul.bf16.gmra.mxu0 %v1609
  %v1824 = vpop.f32.mrf.mxu0
  %v1825 = vadd.f32 0.0, %v1824
  %v1826 = vpop.f32.mrf.mxu0
  %1827 = vdwg.mxu0
  %1828 = vmatpush.bf16.msra.mxu0 %v1768
  %1829 = vmatpush.bf16.msra.mxu0 %v1764
  %1830 = vmatpush.bf16.msra.mxu0 %v1760
  %1831 = vmatpush.bf16.msra.mxu0 %v1756
  %1832 = vmatpush.bf16.msra.mxu0 %v1752
  %1833 = vmatpush.bf16.msra.mxu0 %v1748
  %1834 = vmatpush.bf16.msra.mxu0 %v1744
  %1835 = vmatpush.bf16.msra.mxu0 %v1740
  %1836 = vmatmul.bf16.gmra.mxu0 %v1609
  %v1837 = vpop.f32.mrf.mxu0
  %v1838 = vadd.f32 0.0, %v1837
  %v1839 = vpop.f32.mrf.mxu0
  %1840 = vdwg.mxu0
  %1841 = vmatpush.bf16.msra.mxu0 %v1769
  %1842 = vmatpush.bf16.msra.mxu0 %v1765
  %1843 = vmatpush.bf16.msra.mxu0 %v1761
  %1844 = vmatpush.bf16.msra.mxu0 %v1757
  %1845 = vmatpush.bf16.msra.mxu0 %v1753
  %1846 = vmatpush.bf16.msra.mxu0 %v1749
  %1847 = vmatpush.bf16.msra.mxu0 %v1745
  %1848 = vmatpush.bf16.msra.mxu0 %v1741
  %1849 = vmatmul.bf16.gmra.mxu0 %v1609
  %v1850 = vpop.f32.mrf.mxu0
  %v1851 = vadd.f32 0.0, %v1850
  %v1852 = vpop.f32.mrf.mxu0
  %1853 = vdwg.mxu0
  %v1854 = vadd.f32 %v1605, %v1812
  %v1855 = vadd.f32 %v1606, %v1825
  %v1856 = vadd.f32 %v1607, %v1838
  %v1857 = vadd.f32 %v1608, %v1851
  %v1858 = vxor.u32 %v1854, 2147483648
  %v1859 = vxor.u32 %v1855, 2147483648
  %v1860 = vxor.u32 %v1856, 2147483648
  %v1861 = vmul.f32 %v1858, 1.442695
  %v1862 = vpow.pop %v1861
  %v1863 = vmul.f32 %v1859, 1.442695
  %v1864 = vpow.pop %v1863
  %v1865 = vmul.f32 %v1860, 1.442695
  %v1866 = vpow.pop %v1865
  %v1867 = vadd.f32 %v1862, 1.0
  %v1868 = vadd.f32 %v1864, 1.0
  %v1869 = vadd.f32 %v1866, 1.0
  %v1870 = vrcp.pop %v1867
  %v1871 = vmul.f32 %v1867, %v1870
  %v1872 = vsub.f32 1.0, %v1871
  %v1873 = vmul.f32 %v1870, %v1872
  %v1874 = vadd.f32 %v1870, %v1873
  %vm1875 = vweird.f32 %v1867
  %vm1876 = vweird.f32 %v1870
  %vm1877 = vmor %vm1875, %vm1876
  %v1878 = vsel %vm1877, %v1870, %v1874
  %v1879 = vand.u32 2147483647, %v1867
  %vm1880 = vcmp.eq.f32.partialorder %v1879, 8.507059e+37
  %v1881 = vand.u32 %v1867, 2147483648
  %v1882 = vor.u32 1.1754944e-38, %v1881
  %v1883 = vsel %vm1880, %v1882, %v1878
  %v1884 = vmul.f32 1.0, %v1883
  %v1885 = vrcp.pop %v1868
  %v1886 = vmul.f32 %v1868, %v1885
  %v1887 = vsub.f32 1.0, %v1886
  %v1888 = vmul.f32 %v1885, %v1887
  %v1889 = vadd.f32 %v1885, %v1888
  %vm1890 = vweird.f32 %v1868
  %vm1891 = vweird.f32 %v1885
  %vm1892 = vmor %vm1890, %vm1891
  %v1893 = vsel %vm1892, %v1885, %v1889
  %v1894 = vand.u32 2147483647, %v1868
  %vm1895 = vcmp.eq.f32.partialorder %v1894, 8.507059e+37
  %v1896 = vand.u32 %v1868, 2147483648
  %v1897 = vor.u32 1.1754944e-38, %v1896
  %v1898 = vsel %vm1895, %v1897, %v1893
  %v1899 = vmul.f32 1.0, %v1898
  %v1900 = vrcp.pop %v1869
  %v1901 = vmul.f32 %v1869, %v1900
  %v1902 = vsub.f32 1.0, %v1901
  %v1903 = vmul.f32 %v1900, %v1902
  %v1904 = vadd.f32 %v1900, %v1903
  %vm1905 = vweird.f32 %v1869
  %vm1906 = vweird.f32 %v1900
  %vm1907 = vmor %vm1905, %vm1906
  %v1908 = vsel %vm1907, %v1900, %v1904
  %v1909 = vand.u32 2147483647, %v1869
  %vm1910 = vcmp.eq.f32.partialorder %v1909, 8.507059e+37
  %v1911 = vand.u32 %v1869, 2147483648
  %v1912 = vor.u32 1.1754944e-38, %v1911
  %v1913 = vsel %vm1910, %v1912, %v1908
  %v1914 = vmul.f32 1.0, %v1913
  %v1915 = vtanh.pop %v1857
  %v1916 = vmul.f32 %v1899, %v1599
  %v1917 = vmul.f32 %v1884, %v1915
  %v1918 = vadd.f32 %v1916, %v1917
  %v1919 = vtanh.pop %v1918
  %v1920 = vmul.f32 %v1914, %v1919
  %s1921 = scalar_lea.vmem %s2, 40
  %1922 = vst [vmem:[%s1921] sm:$0xff] %v1920
  %s1923 = scalar_lea.vmem %s0, 192
  %v1924 = vld [vmem:[%s1923] sm:$0xff]
  %v1925 = vld [vmem:[%s1923 + $0x8] sm:$0xff]
  %v1926 = vld [vmem:[%s1923 + $0x10] sm:$0xff]
  %v1927 = vld [vmem:[%s1923 + $0x18] sm:$0xff]
  %v1928 = vpack.c.bf16 %v1920, %v1920
  %v1929 = vld [vmem:[%s1] sm:$0xff]
  %v1930 = vld [vmem:[%s1 + $0x8] sm:$0xff]
  %v1931 = vld [vmem:[%s1 + $0x10] sm:$0xff]
  %v1932 = vld [vmem:[%s1 + $0x18] sm:$0xff]
  %v1933 = vld [vmem:[%s1 + $0x20] sm:$0xff]
  %v1934 = vld [vmem:[%s1 + $0x28] sm:$0xff]
  %v1935 = vld [vmem:[%s1 + $0x30] sm:$0xff]
  %v1936 = vld [vmem:[%s1 + $0x38] sm:$0xff]
  %v1937 = vld [vmem:[%s1 + $0x40] sm:$0xff]
  %v1938 = vld [vmem:[%s1 + $0x48] sm:$0xff]
  %v1939 = vld [vmem:[%s1 + $0x50] sm:$0xff]
  %v1940 = vld [vmem:[%s1 + $0x58] sm:$0xff]
  %v1941 = vld [vmem:[%s1 + $0x60] sm:$0xff]
  %v1942 = vld [vmem:[%s1 + $0x68] sm:$0xff]
  %v1943 = vld [vmem:[%s1 + $0x70] sm:$0xff]
  %v1944 = vld [vmem:[%s1 + $0x78] sm:$0xff]
  %v1945 = vld [vmem:[%s1 + $0x80] sm:$0xff]
  %v1946 = vld [vmem:[%s1 + $0x88] sm:$0xff]
  %v1947 = vld [vmem:[%s1 + $0x90] sm:$0xff]
  %v1948 = vld [vmem:[%s1 + $0x98] sm:$0xff]
  %v1949 = vld [vmem:[%s1 + $0xa0] sm:$0xff]
  %v1950 = vld [vmem:[%s1 + $0xa8] sm:$0xff]
  %v1951 = vld [vmem:[%s1 + $0xb0] sm:$0xff]
  %v1952 = vld [vmem:[%s1 + $0xb8] sm:$0xff]
  %v1953 = vld [vmem:[%s1 + $0xc0] sm:$0xff]
  %v1954 = vld [vmem:[%s1 + $0xc8] sm:$0xff]
  %v1955 = vld [vmem:[%s1 + $0xd0] sm:$0xff]
  %v1956 = vld [vmem:[%s1 + $0xd8] sm:$0xff]
  %v1957 = vld [vmem:[%s1 + $0xe0] sm:$0xff]
  %v1958 = vld [vmem:[%s1 + $0xe8] sm:$0xff]
  %v1959 = vld [vmem:[%s1 + $0xf0] sm:$0xff]
  %v1960 = vld [vmem:[%s1 + $0xf8] sm:$0xff]
  %v1993 = vunpack.c.l.b16 %v1929
  %v1994 = vunpack.c.h.b16 %v1929
  %v1995 = vunpack.c.l.b16 %v1930
  %v1996 = vunpack.c.h.b16 %v1930
  %v1997 = vunpack.c.l.b16 %v1931
  %v1998 = vunpack.c.h.b16 %v1931
  %v1999 = vunpack.c.l.b16 %v1932
  %v2000 = vunpack.c.h.b16 %v1932
  %v2001 = vunpack.c.l.b16 %v1933
  %v2002 = vunpack.c.h.b16 %v1933
  %v2003 = vunpack.c.l.b16 %v1934
  %v2004 = vunpack.c.h.b16 %v1934
  %v2005 = vunpack.c.l.b16 %v1935
  %v2006 = vunpack.c.h.b16 %v1935
  %v2007 = vunpack.c.l.b16 %v1936
  %v2008 = vunpack.c.h.b16 %v1936
  %v2009 = vunpack.c.l.b16 %v1937
  %v2010 = vunpack.c.h.b16 %v1937
  %v2011 = vunpack.c.l.b16 %v1938
  %v2012 = vunpack.c.h.b16 %v1938
  %v2013 = vunpack.c.l.b16 %v1939
  %v2014 = vunpack.c.h.b16 %v1939
  %v2015 = vunpack.c.l.b16 %v1940
  %v2016 = vunpack.c.h.b16 %v1940
  %v2017 = vunpack.c.l.b16 %v1941
  %v2018 = vunpack.c.h.b16 %v1941
  %v2019 = vunpack.c.l.b16 %v1942
  %v2020 = vunpack.c.h.b16 %v1942
  %v2021 = vunpack.c.l.b16 %v1943
  %v2022 = vunpack.c.h.b16 %v1943
  %v2023 = vunpack.c.l.b16 %v1944
  %v2024 = vunpack.c.h.b16 %v1944
  %v2025 = vunpack.c.l.b16 %v1945
  %v2026 = vunpack.c.h.b16 %v1945
  %v2027 = vunpack.c.l.b16 %v1946
  %v2028 = vunpack.c.h.b16 %v1946
  %v2029 = vunpack.c.l.b16 %v1947
  %v2030 = vunpack.c.h.b16 %v1947
  %v2031 = vunpack.c.l.b16 %v1948
  %v2032 = vunpack.c.h.b16 %v1948
  %v2033 = vunpack.c.l.b16 %v1949
  %v2034 = vunpack.c.h.b16 %v1949
  %v2035 = vunpack.c.l.b16 %v1950
  %v2036 = vunpack.c.h.b16 %v1950
  %v2037 = vunpack.c.l.b16 %v1951
  %v2038 = vunpack.c.h.b16 %v1951
  %v2039 = vunpack.c.l.b16 %v1952
  %v2040 = vunpack.c.h.b16 %v1952
  %v2041 = vunpack.c.l.b16 %v1953
  %v2042 = vunpack.c.h.b16 %v1953
  %v2043 = vunpack.c.l.b16 %v1954
  %v2044 = vunpack.c.h.b16 %v1954
  %v2045 = vunpack.c.l.b16 %v1955
  %v2046 = vunpack.c.h.b16 %v1955
  %v2047 = vunpack.c.l.b16 %v1956
  %v2048 = vunpack.c.h.b16 %v1956
  %v2049 = vunpack.c.l.b16 %v1957
  %v2050 = vunpack.c.h.b16 %v1957
  %v2051 = vunpack.c.l.b16 %v1958
  %v2052 = vunpack.c.h.b16 %v1958
  %v2053 = vunpack.c.l.b16 %v1959
  %v2054 = vunpack.c.h.b16 %v1959
  %v2055 = vunpack.c.l.b16 %v1960
  %v2056 = vunpack.c.h.b16 %v1960
  %v2057 = vpack.c.b16 %v1997, %v1993
  %v2058 = vpack.c.b16 %v1998, %v1994
  %v2059 = vpack.c.b16 %v1999, %v1995
  %v2060 = vpack.c.b16 %v2000, %v1996
  %v2061 = vpack.c.b16 %v2005, %v2001
  %v2062 = vpack.c.b16 %v2006, %v2002
  %v2063 = vpack.c.b16 %v2007, %v2003
  %v2064 = vpack.c.b16 %v2008, %v2004
  %v2065 = vpack.c.b16 %v2013, %v2009
  %v2066 = vpack.c.b16 %v2014, %v2010
  %v2067 = vpack.c.b16 %v2015, %v2011
  %v2068 = vpack.c.b16 %v2016, %v2012
  %v2069 = vpack.c.b16 %v2021, %v2017
  %v2070 = vpack.c.b16 %v2022, %v2018
  %v2071 = vpack.c.b16 %v2023, %v2019
  %v2072 = vpack.c.b16 %v2024, %v2020
  %v2073 = vpack.c.b16 %v2029, %v2025
  %v2074 = vpack.c.b16 %v2030, %v2026
  %v2075 = vpack.c.b16 %v2031, %v2027
  %v2076 = vpack.c.b16 %v2032, %v2028
  %v2077 = vpack.c.b16 %v2037, %v2033
  %v2078 = vpack.c.b16 %v2038, %v2034
  %v2079 = vpack.c.b16 %v2039, %v2035
  %v2080 = vpack.c.b16 %v2040, %v2036
  %v2081 = vpack.c.b16 %v2045, %v2041
  %v2082 = vpack.c.b16 %v2046, %v2042
  %v2083 = vpack.c.b16 %v2047, %v2043
  %v2084 = vpack.c.b16 %v2048, %v2044
  %v2085 = vpack.c.b16 %v2053, %v2049
  %v2086 = vpack.c.b16 %v2054, %v2050
  %v2087 = vpack.c.b16 %v2055, %v2051
  %v2088 = vpack.c.b16 %v2056, %v2052
  %2121 = vmatpush.bf16.msra.mxu0 %v2085
  %2122 = vmatpush.bf16.msra.mxu0 %v2081
  %2123 = vmatpush.bf16.msra.mxu0 %v2077
  %2124 = vmatpush.bf16.msra.mxu0 %v2073
  %2125 = vmatpush.bf16.msra.mxu0 %v2069
  %2126 = vmatpush.bf16.msra.mxu0 %v2065
  %2127 = vmatpush.bf16.msra.mxu0 %v2061
  %2128 = vmatpush.bf16.msra.mxu0 %v2057
  %2129 = vmatmul.bf16.gmra.mxu0 %v1928
  %v2130 = vpop.f32.mrf.mxu0
  %v2131 = vadd.f32 0.0, %v2130
  %v2132 = vpop.f32.mrf.mxu0
  %2133 = vdwg.mxu0
  %2134 = vmatpush.bf16.msra.mxu0 %v2086
  %2135 = vmatpush.bf16.msra.mxu0 %v2082
  %2136 = vmatpush.bf16.msra.mxu0 %v2078
  %2137 = vmatpush.bf16.msra.mxu0 %v2074
  %2138 = vmatpush.bf16.msra.mxu0 %v2070
  %2139 = vmatpush.bf16.msra.mxu0 %v2066
  %2140 = vmatpush.bf16.msra.mxu0 %v2062
  %2141 = vmatpush.bf16.msra.mxu0 %v2058
  %2142 = vmatmul.bf16.gmra.mxu0 %v1928
  %v2143 = vpop.f32.mrf.mxu0
  %v2144 = vadd.f32 0.0, %v2143
  %v2145 = vpop.f32.mrf.mxu0
  %2146 = vdwg.mxu0
  %2147 = vmatpush.bf16.msra.mxu0 %v2087
  %2148 = vmatpush.bf16.msra.mxu0 %v2083
  %2149 = vmatpush.bf16.msra.mxu0 %v2079
  %2150 = vmatpush.bf16.msra.mxu0 %v2075
  %2151 = vmatpush.bf16.msra.mxu0 %v2071
  %2152 = vmatpush.bf16.msra.mxu0 %v2067
  %2153 = vmatpush.bf16.msra.mxu0 %v2063
  %2154 = vmatpush.bf16.msra.mxu0 %v2059
  %2155 = vmatmul.bf16.gmra.mxu0 %v1928
  %v2156 = vpop.f32.mrf.mxu0
  %v2157 = vadd.f32 0.0, %v2156
  %v2158 = vpop.f32.mrf.mxu0
  %2159 = vdwg.mxu0
  %2160 = vmatpush.bf16.msra.mxu0 %v2088
  %2161 = vmatpush.bf16.msra.mxu0 %v2084
  %2162 = vmatpush.bf16.msra.mxu0 %v2080
  %2163 = vmatpush.bf16.msra.mxu0 %v2076
  %2164 = vmatpush.bf16.msra.mxu0 %v2072
  %2165 = vmatpush.bf16.msra.mxu0 %v2068
  %2166 = vmatpush.bf16.msra.mxu0 %v2064
  %2167 = vmatpush.bf16.msra.mxu0 %v2060
  %2168 = vmatmul.bf16.gmra.mxu0 %v1928
  %v2169 = vpop.f32.mrf.mxu0
  %v2170 = vadd.f32 0.0, %v2169
  %v2171 = vpop.f32.mrf.mxu0
  %2172 = vdwg.mxu0
  %v2173 = vadd.f32 %v1924, %v2131
  %v2174 = vadd.f32 %v1925, %v2144
  %v2175 = vadd.f32 %v1926, %v2157
  %v2176 = vadd.f32 %v1927, %v2170
  %v2177 = vxor.u32 %v2173, 2147483648
  %v2178 = vxor.u32 %v2174, 2147483648
  %v2179 = vxor.u32 %v2175, 2147483648
  %v2180 = vmul.f32 %v2177, 1.442695
  %v2181 = vpow.pop %v2180
  %v2182 = vmul.f32 %v2178, 1.442695
  %v2183 = vpow.pop %v2182
  %v2184 = vmul.f32 %v2179, 1.442695
  %v2185 = vpow.pop %v2184
  %v2186 = vadd.f32 %v2181, 1.0
  %v2187 = vadd.f32 %v2183, 1.0
  %v2188 = vadd.f32 %v2185, 1.0
  %v2189 = vrcp.pop %v2186
  %v2190 = vmul.f32 %v2186, %v2189
  %v2191 = vsub.f32 1.0, %v2190
  %v2192 = vmul.f32 %v2189, %v2191
  %v2193 = vadd.f32 %v2189, %v2192
  %vm2194 = vweird.f32 %v2186
  %vm2195 = vweird.f32 %v2189
  %vm2196 = vmor %vm2194, %vm2195
  %v2197 = vsel %vm2196, %v2189, %v2193
  %v2198 = vand.u32 2147483647, %v2186
  %vm2199 = vcmp.eq.f32.partialorder %v2198, 8.507059e+37
  %v2200 = vand.u32 %v2186, 2147483648
  %v2201 = vor.u32 1.1754944e-38, %v2200
  %v2202 = vsel %vm2199, %v2201, %v2197
  %v2203 = vmul.f32 1.0, %v2202
  %v2204 = vrcp.pop %v2187
  %v2205 = vmul.f32 %v2187, %v2204
  %v2206 = vsub.f32 1.0, %v2205
  %v2207 = vmul.f32 %v2204, %v2206
  %v2208 = vadd.f32 %v2204, %v2207
  %vm2209 = vweird.f32 %v2187
  %vm2210 = vweird.f32 %v2204
  %vm2211 = vmor %vm2209, %vm2210
  %v2212 = vsel %vm2211, %v2204, %v2208
  %v2213 = vand.u32 2147483647, %v2187
  %vm2214 = vcmp.eq.f32.partialorder %v2213, 8.507059e+37
  %v2215 = vand.u32 %v2187, 2147483648
  %v2216 = vor.u32 1.1754944e-38, %v2215
  %v2217 = vsel %vm2214, %v2216, %v2212
  %v2218 = vmul.f32 1.0, %v2217
  %v2219 = vrcp.pop %v2188
  %v2220 = vmul.f32 %v2188, %v2219
  %v2221 = vsub.f32 1.0, %v2220
  %v2222 = vmul.f32 %v2219, %v2221
  %v2223 = vadd.f32 %v2219, %v2222
  %vm2224 = vweird.f32 %v2188
  %vm2225 = vweird.f32 %v2219
  %vm2226 = vmor %vm2224, %vm2225
  %v2227 = vsel %vm2226, %v2219, %v2223
  %v2228 = vand.u32 2147483647, %v2188
  %vm2229 = vcmp.eq.f32.partialorder %v2228, 8.507059e+37
  %v2230 = vand.u32 %v2188, 2147483648
  %v2231 = vor.u32 1.1754944e-38, %v2230
  %v2232 = vsel %vm2229, %v2231, %v2227
  %v2233 = vmul.f32 1.0, %v2232
  %v2234 = vtanh.pop %v2176
  %v2235 = vmul.f32 %v2218, %v1918
  %v2236 = vmul.f32 %v2203, %v2234
  %v2237 = vadd.f32 %v2235, %v2236
  %v2238 = vtanh.pop %v2237
  %v2239 = vmul.f32 %v2233, %v2238
  %s2240 = scalar_lea.vmem %s2, 48
  %2241 = vst [vmem:[%s2240] sm:$0xff] %v2239
  %s2242 = scalar_lea.vmem %s0, 224
  %v2243 = vld [vmem:[%s2242] sm:$0xff]
  %v2244 = vld [vmem:[%s2242 + $0x8] sm:$0xff]
  %v2245 = vld [vmem:[%s2242 + $0x10] sm:$0xff]
  %v2246 = vld [vmem:[%s2242 + $0x18] sm:$0xff]
  %v2247 = vpack.c.bf16 %v2239, %v2239
  %v2248 = vld [vmem:[%s1] sm:$0xff]
  %v2249 = vld [vmem:[%s1 + $0x8] sm:$0xff]
  %v2250 = vld [vmem:[%s1 + $0x10] sm:$0xff]
  %v2251 = vld [vmem:[%s1 + $0x18] sm:$0xff]
  %v2252 = vld [vmem:[%s1 + $0x20] sm:$0xff]
  %v2253 = vld [vmem:[%s1 + $0x28] sm:$0xff]
  %v2254 = vld [vmem:[%s1 + $0x30] sm:$0xff]
  %v2255 = vld [vmem:[%s1 + $0x38] sm:$0xff]
  %v2256 = vld [vmem:[%s1 + $0x40] sm:$0xff]
  %v2257 = vld [vmem:[%s1 + $0x48] sm:$0xff]
  %v2258 = vld [vmem:[%s1 + $0x50] sm:$0xff]
  %v2259 = vld [vmem:[%s1 + $0x58] sm:$0xff]
  %v2260 = vld [vmem:[%s1 + $0x60] sm:$0xff]
  %v2261 = vld [vmem:[%s1 + $0x68] sm:$0xff]
  %v2262 = vld [vmem:[%s1 + $0x70] sm:$0xff]
  %v2263 = vld [vmem:[%s1 + $0x78] sm:$0xff]
  %v2264 = vld [vmem:[%s1 + $0x80] sm:$0xff]
  %v2265 = vld [vmem:[%s1 + $0x88] sm:$0xff]
  %v2266 = vld [vmem:[%s1 + $0x90] sm:$0xff]
  %v2267 = vld [vmem:[%s1 + $0x98] sm:$0xff]
  %v2268 = vld [vmem:[%s1 + $0xa0] sm:$0xff]
  %v2269 = vld [vmem:[%s1 + $0xa8] sm:$0xff]
  %v2270 = vld [vmem:[%s1 + $0xb0] sm:$0xff]
  %v2271 = vld [vmem:[%s1 + $0xb8] sm:$0xff]
  %v2272 = vld [vmem:[%s1 + $0xc0] sm:$0xff]
  %v2273 = vld [vmem:[%s1 + $0xc8] sm:$0xff]
  %v2274 = vld [vmem:[%s1 + $0xd0] sm:$0xff]
  %v2275 = vld [vmem:[%s1 + $0xd8] sm:$0xff]
  %v2276 = vld [vmem:[%s1 + $0xe0] sm:$0xff]
  %v2277 = vld [vmem:[%s1 + $0xe8] sm:$0xff]
  %v2278 = vld [vmem:[%s1 + $0xf0] sm:$0xff]
  %v2279 = vld [vmem:[%s1 + $0xf8] sm:$0xff]
  %v2312 = vunpack.c.l.b16 %v2248
  %v2313 = vunpack.c.h.b16 %v2248
  %v2314 = vunpack.c.l.b16 %v2249
  %v2315 = vunpack.c.h.b16 %v2249
  %v2316 = vunpack.c.l.b16 %v2250
  %v2317 = vunpack.c.h.b16 %v2250
  %v2318 = vunpack.c.l.b16 %v2251
  %v2319 = vunpack.c.h.b16 %v2251
  %v2320 = vunpack.c.l.b16 %v2252
  %v2321 = vunpack.c.h.b16 %v2252
  %v2322 = vunpack.c.l.b16 %v2253
  %v2323 = vunpack.c.h.b16 %v2253
  %v2324 = vunpack.c.l.b16 %v2254
  %v2325 = vunpack.c.h.b16 %v2254
  %v2326 = vunpack.c.l.b16 %v2255
  %v2327 = vunpack.c.h.b16 %v2255
  %v2328 = vunpack.c.l.b16 %v2256
  %v2329 = vunpack.c.h.b16 %v2256
  %v2330 = vunpack.c.l.b16 %v2257
  %v2331 = vunpack.c.h.b16 %v2257
  %v2332 = vunpack.c.l.b16 %v2258
  %v2333 = vunpack.c.h.b16 %v2258
  %v2334 = vunpack.c.l.b16 %v2259
  %v2335 = vunpack.c.h.b16 %v2259
  %v2336 = vunpack.c.l.b16 %v2260
  %v2337 = vunpack.c.h.b16 %v2260
  %v2338 = vunpack.c.l.b16 %v2261
  %v2339 = vunpack.c.h.b16 %v2261
  %v2340 = vunpack.c.l.b16 %v2262
  %v2341 = vunpack.c.h.b16 %v2262
  %v2342 = vunpack.c.l.b16 %v2263
  %v2343 = vunpack.c.h.b16 %v2263
  %v2344 = vunpack.c.l.b16 %v2264
  %v2345 = vunpack.c.h.b16 %v2264
  %v2346 = vunpack.c.l.b16 %v2265
  %v2347 = vunpack.c.h.b16 %v2265
  %v2348 = vunpack.c.l.b16 %v2266
  %v2349 = vunpack.c.h.b16 %v2266
  %v2350 = vunpack.c.l.b16 %v2267
  %v2351 = vunpack.c.h.b16 %v2267
  %v2352 = vunpack.c.l.b16 %v2268
  %v2353 = vunpack.c.h.b16 %v2268
  %v2354 = vunpack.c.l.b16 %v2269
  %v2355 = vunpack.c.h.b16 %v2269
  %v2356 = vunpack.c.l.b16 %v2270
  %v2357 = vunpack.c.h.b16 %v2270
  %v2358 = vunpack.c.l.b16 %v2271
  %v2359 = vunpack.c.h.b16 %v2271
  %v2360 = vunpack.c.l.b16 %v2272
  %v2361 = vunpack.c.h.b16 %v2272
  %v2362 = vunpack.c.l.b16 %v2273
  %v2363 = vunpack.c.h.b16 %v2273
  %v2364 = vunpack.c.l.b16 %v2274
  %v2365 = vunpack.c.h.b16 %v2274
  %v2366 = vunpack.c.l.b16 %v2275
  %v2367 = vunpack.c.h.b16 %v2275
  %v2368 = vunpack.c.l.b16 %v2276
  %v2369 = vunpack.c.h.b16 %v2276
  %v2370 = vunpack.c.l.b16 %v2277
  %v2371 = vunpack.c.h.b16 %v2277
  %v2372 = vunpack.c.l.b16 %v2278
  %v2373 = vunpack.c.h.b16 %v2278
  %v2374 = vunpack.c.l.b16 %v2279
  %v2375 = vunpack.c.h.b16 %v2279
  %v2376 = vpack.c.b16 %v2316, %v2312
  %v2377 = vpack.c.b16 %v2317, %v2313
  %v2378 = vpack.c.b16 %v2318, %v2314
  %v2379 = vpack.c.b16 %v2319, %v2315
  %v2380 = vpack.c.b16 %v2324, %v2320
  %v2381 = vpack.c.b16 %v2325, %v2321
  %v2382 = vpack.c.b16 %v2326, %v2322
  %v2383 = vpack.c.b16 %v2327, %v2323
  %v2384 = vpack.c.b16 %v2332, %v2328
  %v2385 = vpack.c.b16 %v2333, %v2329
  %v2386 = vpack.c.b16 %v2334, %v2330
  %v2387 = vpack.c.b16 %v2335, %v2331
  %v2388 = vpack.c.b16 %v2340, %v2336
  %v2389 = vpack.c.b16 %v2341, %v2337
  %v2390 = vpack.c.b16 %v2342, %v2338
  %v2391 = vpack.c.b16 %v2343, %v2339
  %v2392 = vpack.c.b16 %v2348, %v2344
  %v2393 = vpack.c.b16 %v2349, %v2345
  %v2394 = vpack.c.b16 %v2350, %v2346
  %v2395 = vpack.c.b16 %v2351, %v2347
  %v2396 = vpack.c.b16 %v2356, %v2352
  %v2397 = vpack.c.b16 %v2357, %v2353
  %v2398 = vpack.c.b16 %v2358, %v2354
  %v2399 = vpack.c.b16 %v2359, %v2355
  %v2400 = vpack.c.b16 %v2364, %v2360
  %v2401 = vpack.c.b16 %v2365, %v2361
  %v2402 = vpack.c.b16 %v2366, %v2362
  %v2403 = vpack.c.b16 %v2367, %v2363
  %v2404 = vpack.c.b16 %v2372, %v2368
  %v2405 = vpack.c.b16 %v2373, %v2369
  %v2406 = vpack.c.b16 %v2374, %v2370
  %v2407 = vpack.c.b16 %v2375, %v2371
  %2440 = vmatpush.bf16.msra.mxu0 %v2404
  %2441 = vmatpush.bf16.msra.mxu0 %v2400
  %2442 = vmatpush.bf16.msra.mxu0 %v2396
  %2443 = vmatpush.bf16.msra.mxu0 %v2392
  %2444 = vmatpush.bf16.msra.mxu0 %v2388
  %2445 = vmatpush.bf16.msra.mxu0 %v2384
  %2446 = vmatpush.bf16.msra.mxu0 %v2380
  %2447 = vmatpush.bf16.msra.mxu0 %v2376
  %2448 = vmatmul.bf16.gmra.mxu0 %v2247
  %v2449 = vpop.f32.mrf.mxu0
  %v2450 = vadd.f32 0.0, %v2449
  %v2451 = vpop.f32.mrf.mxu0
  %2452 = vdwg.mxu0
  %2453 = vmatpush.bf16.msra.mxu0 %v2405
  %2454 = vmatpush.bf16.msra.mxu0 %v2401
  %2455 = vmatpush.bf16.msra.mxu0 %v2397
  %2456 = vmatpush.bf16.msra.mxu0 %v2393
  %2457 = vmatpush.bf16.msra.mxu0 %v2389
  %2458 = vmatpush.bf16.msra.mxu0 %v2385
  %2459 = vmatpush.bf16.msra.mxu0 %v2381
  %2460 = vmatpush.bf16.msra.mxu0 %v2377
  %2461 = vmatmul.bf16.gmra.mxu0 %v2247
  %v2462 = vpop.f32.mrf.mxu0
  %v2463 = vadd.f32 0.0, %v2462
  %v2464 = vpop.f32.mrf.mxu0
  %2465 = vdwg.mxu0
  %2466 = vmatpush.bf16.msra.mxu0 %v2406
  %2467 = vmatpush.bf16.msra.mxu0 %v2402
  %2468 = vmatpush.bf16.msra.mxu0 %v2398
  %2469 = vmatpush.bf16.msra.mxu0 %v2394
  %2470 = vmatpush.bf16.msra.mxu0 %v2390
  %2471 = vmatpush.bf16.msra.mxu0 %v2386
  %2472 = vmatpush.bf16.msra.mxu0 %v2382
  %2473 = vmatpush.bf16.msra.mxu0 %v2378
  %2474 = vmatmul.bf16.gmra.mxu0 %v2247
  %v2475 = vpop.f32.mrf.mxu0
  %v2476 = vadd.f32 0.0, %v2475
  %v2477 = vpop.f32.mrf.mxu0
  %2478 = vdwg.mxu0
  %2479 = vmatpush.bf16.msra.mxu0 %v2407
  %2480 = vmatpush.bf16.msra.mxu0 %v2403
  %2481 = vmatpush.bf16.msra.mxu0 %v2399
  %2482 = vmatpush.bf16.msra.mxu0 %v2395
  %2483 = vmatpush.bf16.msra.mxu0 %v2391
  %2484 = vmatpush.bf16.msra.mxu0 %v2387
  %2485 = vmatpush.bf16.msra.mxu0 %v2383
  %2486 = vmatpush.bf16.msra.mxu0 %v2379
  %2487 = vmatmul.bf16.gmra.mxu0 %v2247
  %v2488 = vpop.f32.mrf.mxu0
  %v2489 = vadd.f32 0.0, %v2488
  %v2490 = vpop.f32.mrf.mxu0
  %2491 = vdwg.mxu0
  %v2492 = vadd.f32 %v2243, %v2450
  %v2493 = vadd.f32 %v2244, %v2463
  %v2494 = vadd.f32 %v2245, %v2476
  %v2495 = vadd.f32 %v2246, %v2489
  %v2496 = vxor.u32 %v2492, 2147483648
  %v2497 = vxor.u32 %v2493, 2147483648
  %v2498 = vxor.u32 %v2494, 2147483648
  %v2499 = vmul.f32 %v2496, 1.442695
  %v2500 = vpow.pop %v2499
  %v2501 = vmul.f32 %v2497, 1.442695
  %v2502 = vpow.pop %v2501
  %v2503 = vmul.f32 %v2498, 1.442695
  %v2504 = vpow.pop %v2503
  %v2505 = vadd.f32 %v2500, 1.0
  %v2506 = vadd.f32 %v2502, 1.0
  %v2507 = vadd.f32 %v2504, 1.0
  %v2508 = vrcp.pop %v2505
  %v2509 = vmul.f32 %v2505, %v2508
  %v2510 = vsub.f32 1.0, %v2509
  %v2511 = vmul.f32 %v2508, %v2510
  %v2512 = vadd.f32 %v2508, %v2511
  %vm2513 = vweird.f32 %v2505
  %vm2514 = vweird.f32 %v2508
  %vm2515 = vmor %vm2513, %vm2514
  %v2516 = vsel %vm2515, %v2508, %v2512
  %v2517 = vand.u32 2147483647, %v2505
  %vm2518 = vcmp.eq.f32.partialorder %v2517, 8.507059e+37
  %v2519 = vand.u32 %v2505, 2147483648
  %v2520 = vor.u32 1.1754944e-38, %v2519
  %v2521 = vsel %vm2518, %v2520, %v2516
  %v2522 = vmul.f32 1.0, %v2521
  %v2523 = vrcp.pop %v2506
  %v2524 = vmul.f32 %v2506, %v2523
  %v2525 = vsub.f32 1.0, %v2524
  %v2526 = vmul.f32 %v2523, %v2525
  %v2527 = vadd.f32 %v2523, %v2526
  %vm2528 = vweird.f32 %v2506
  %vm2529 = vweird.f32 %v2523
  %vm2530 = vmor %vm2528, %vm2529
  %v2531 = vsel %vm2530, %v2523, %v2527
  %v2532 = vand.u32 2147483647, %v2506
  %vm2533 = vcmp.eq.f32.partialorder %v2532, 8.507059e+37
  %v2534 = vand.u32 %v2506, 2147483648
  %v2535 = vor.u32 1.1754944e-38, %v2534
  %v2536 = vsel %vm2533, %v2535, %v2531
  %v2537 = vmul.f32 1.0, %v2536
  %v2538 = vrcp.pop %v2507
  %v2539 = vmul.f32 %v2507, %v2538
  %v2540 = vsub.f32 1.0, %v2539
  %v2541 = vmul.f32 %v2538, %v2540
  %v2542 = vadd.f32 %v2538, %v2541
  %vm2543 = vweird.f32 %v2507
  %vm2544 = vweird.f32 %v2538
  %vm2545 = vmor %vm2543, %vm2544
  %v2546 = vsel %vm2545, %v2538, %v2542
  %v2547 = vand.u32 2147483647, %v2507
  %vm2548 = vcmp.eq.f32.partialorder %v2547, 8.507059e+37
  %v2549 = vand.u32 %v2507, 2147483648
  %v2550 = vor.u32 1.1754944e-38, %v2549
  %v2551 = vsel %vm2548, %v2550, %v2546
  %v2552 = vmul.f32 1.0, %v2551
  %v2553 = vtanh.pop %v2495
  %v2554 = vmul.f32 %v2537, %v2237
  %v2555 = vmul.f32 %v2522, %v2553
  %v2556 = vadd.f32 %v2554, %v2555
  %v2557 = vtanh.pop %v2556
  %v2558 = vmul.f32 %v2552, %v2557
  %s2559 = scalar_lea.vmem %s2, 56
  %2560 = vst [vmem:[%s2559] sm:$0xff] %v2558
  // Predicated region
  $region10: #{temporal_lstm_layer.2} parent=0 // pred_check
    _
  $region11: #{temporal_lstm_layer.2} parent=0 // pred_check_branch
    %2562 = sbr.rel (0) target = $region13
  $region12: #{temporal_lstm_layer.2} parent=0 // pred_region
    _
  $region13: #{temporal_lstm_layer.2} parent=0 // pred_fallthru
    _
  // Predicated region
  $region14: #{temporal_lstm_layer.2} parent=0 // pred_check
    _
  $region15: #{temporal_lstm_layer.2} parent=0 // pred_check_branch
    %2564 = sbr.rel (0) target = $region17
  $region16: #{temporal_lstm_layer.2} parent=0 // pred_region
    _
  $region17: #{temporal_lstm_layer.2} parent=0 // pred_fallthru
    _

</llo_original>
